<compile_context>
chip_gen: v5e
topology: v5e:2x2
jax: 0.10.0
libtpu: 0.0.40
codegen_flags: <defaults>
</compile_context>

<pallas_src>
import numpy as np
import jax
import jax.numpy as jnp
from jax.experimental import pallas as pl
from jax.experimental.pallas import tpu as pltpu

EPS1 = 0.05  # batch_norm1 eps
EPS2 = 0.01  # batch_norm2 eps


def _mean_keep(x, inv_n):
    # Per-channel mean over (N, HW): reduce lane axis first (XLU), then the
    # leading axis (elementwise adds).  Result shape (1, C, 1).
    return jnp.sum(jnp.sum(x, axis=2, keepdims=True), axis=0, keepdims=True) * inv_n


def bn_sig_bn_sig_kernel(x_ref, g1_ref, b1_ref, g2_ref, b2_ref, o_ref):
    # x_ref: (N, C, HW) f32 in VMEM.  g*/b*: (1, C, 1) f32 in VMEM.
    x = x_ref[...]
    n_red = x.shape[0] * x.shape[2]
    inv_n = 1.0 / float(n_red)

    # --- BatchNorm2d #1 (training mode: batch mean, biased variance) ---
    # one pass: mean = E[x], var = E[x^2] - mean^2
    mean1 = _mean_keep(x, inv_n)
    var1 = _mean_keep(x * x, inv_n) - mean1 * mean1
    scale1 = jax.lax.rsqrt(var1 + EPS1) * g1_ref[...]
    y = (x - mean1) * scale1 + b1_ref[...]

    # --- sigmoid (EUP) ---
    s = jax.nn.sigmoid(y)

    # --- BatchNorm2d #2 ---
    mean2 = _mean_keep(s, inv_n)
    var2 = _mean_keep(s * s, inv_n) - mean2 * mean2
    scale2 = jax.lax.rsqrt(var2 + EPS2) * g2_ref[...]
    z = (s - mean2) * scale2 + b2_ref[...]

    # --- sigmoid ---
    o_ref[...] = jax.nn.sigmoid(z)


def fused_bn_sigmoid(x_nchw, g1, b1, g2, b2):
    N, C, H, W = x_nchw.shape
    HW = H * W
    # NCHW -> (N, C, H*W) is a free, contiguous reshape (no transpose).
    x3 = x_nchw.reshape(N, C, HW).astype(jnp.float32)

    g1 = g1.reshape(1, C, 1).astype(jnp.float32)
    b1 = b1.reshape(1, C, 1).astype(jnp.float32)
    g2 = g2.reshape(1, C, 1).astype(jnp.float32)
    b2 = b2.reshape(1, C, 1).astype(jnp.float32)

    vmem_spec = pl.BlockSpec(memory_space=pltpu.MemorySpace.VMEM)

    out3 = pl.pallas_call(
        bn_sig_bn_sig_kernel,
        out_shape=jax.ShapeDtypeStruct((N, C, HW), jnp.float32),
        in_specs=[vmem_spec] * 5,
        out_specs=vmem_spec,
    )(x3, g1, b1, g2, b2)

    # (N, C, H*W) -> NCHW: free reshape.
    return out3.reshape(N, C, H, W)


def adaptive_avg_pool2d(x_nchw, out_hw):
    """AdaptiveAvgPool2d.  Identity (skipped) when output == input spatial size;
    otherwise a pooling-matrix contraction (single einsum) matching
    torch.nn.AdaptiveAvgPool2d window logic."""
    N, C, H, W = x_nchw.shape
    OH, OW = out_hw
    if (OH, OW) == (H, W):
        return x_nchw  # identity for the reference 7x7 -> (7,7) case

    def pool_matrix(in_size, out_size):
        m = np.zeros((out_size, in_size), dtype=np.float32)
        for i in range(out_size):
            a = (i * in_size) // out_size
            b = -(-((i + 1) * in_size) // out_size)
            m[i, a:b] = 1.0 / (b - a)
        return jnp.asarray(m)

    ph = pool_matrix(H, OH)  # (OH, H)
    pw = pool_matrix(W, OW)  # (OW, W)
    return jnp.einsum("nchw,oh,pw->ncop", x_nchw, ph, pw)


def model_forward(x_nchw, params):
    g1, b1, g2, b2 = params
    v4 = fused_bn_sigmoid(x_nchw, g1, b1, g2, b2)
    v5 = adaptive_avg_pool2d(v4, (7, 7))
    return v5


if __name__ == "__main__":
    key = jax.random.PRNGKey(0)
    N, C, H, W = 8, 32, 7, 7  # small-batch version of x7 = torch.randn(32, 32, 7, 7)
    x = jax.random.normal(key, (N, C, H, W), dtype=jnp.float32)

    # PyTorch BatchNorm2d default init: weight = 1, bias = 0 (deterministic)
    g1 = jnp.ones((C,), jnp.float32)
    b1 = jnp.zeros((C,), jnp.float32)
    g2 = jnp.ones((C,), jnp.float32)
    b2 = jnp.zeros((C,), jnp.float32)

    fwd = jax.jit(model_forward)
    out = fwd(x, (g1, b1, g2, b2))
    jax.block_until_ready(out)
    assert out.shape == (N, C, 7, 7), out.shape
    print("KERNEL_OK")
</pallas_src>

<mosaic_0001>
module attributes {stable_mosaic.version = 11 : i64} {
  func.func @bn_sig_bn_sig_kernel(%arg0: memref<8x32x49xf32, #tpu.memory_space<vmem>>, %arg1: memref<1x32x1xf32, #tpu.memory_space<vmem>>, %arg2: memref<1x32x1xf32, #tpu.memory_space<vmem>>, %arg3: memref<1x32x1xf32, #tpu.memory_space<vmem>>, %arg4: memref<1x32x1xf32, #tpu.memory_space<vmem>>, %arg5: memref<8x32x49xf32, #tpu.memory_space<vmem>>) attributes {dimension_semantics = [], scalar_prefetch = 0 : i64, scratch_operands = 0 : i64, tpu.core_type = #tpu.core_type<tc>} {
    %c0 = arith.constant 0 : index
    %c0_0 = arith.constant 0 : index
    %c0_1 = arith.constant 0 : index
    %0 = vector.load %arg0[%c0, %c0_0, %c0_1] : memref<8x32x49xf32, #tpu.memory_space<vmem>>, vector<8x32x49xf32>
    %cst = arith.constant dense<0.000000e+00> : vector<8x32xf32>
    %1 = vector.multi_reduction <add>, %0, %cst [2] : vector<8x32x49xf32> to vector<8x32xf32>
    %2 = vector.shape_cast %1 : vector<8x32xf32> to vector<8x32x1xf32>
    %cst_2 = arith.constant dense<0.000000e+00> : vector<32x1xf32>
    %3 = vector.multi_reduction <add>, %2, %cst_2 [0] : vector<8x32x1xf32> to vector<32x1xf32>
    %4 = vector.shape_cast %3 : vector<32x1xf32> to vector<1x32x1xf32>
    %cst_3 = arith.constant 0.00255102036 : f32
    %5 = vector.broadcast %cst_3 : f32 to vector<1x32x1xf32>
    %6 = arith.mulf %4, %5 : vector<1x32x1xf32>
    %7 = arith.mulf %0, %0 : vector<8x32x49xf32>
    %cst_4 = arith.constant dense<0.000000e+00> : vector<8x32xf32>
    %8 = vector.multi_reduction <add>, %7, %cst_4 [2] : vector<8x32x49xf32> to vector<8x32xf32>
    %9 = vector.shape_cast %8 : vector<8x32xf32> to vector<8x32x1xf32>
    %cst_5 = arith.constant dense<0.000000e+00> : vector<32x1xf32>
    %10 = vector.multi_reduction <add>, %9, %cst_5 [0] : vector<8x32x1xf32> to vector<32x1xf32>
    %11 = vector.shape_cast %10 : vector<32x1xf32> to vector<1x32x1xf32>
    %cst_6 = arith.constant 0.00255102036 : f32
    %12 = vector.broadcast %cst_6 : f32 to vector<1x32x1xf32>
    %13 = arith.mulf %11, %12 : vector<1x32x1xf32>
    %14 = arith.mulf %6, %6 : vector<1x32x1xf32>
    %15 = arith.subf %13, %14 : vector<1x32x1xf32>
    %cst_7 = arith.constant 5.000000e-02 : f32
    %16 = vector.broadcast %cst_7 : f32 to vector<1x32x1xf32>
    %17 = arith.addf %15, %16 : vector<1x32x1xf32>
    %18 = math.rsqrt %17 : vector<1x32x1xf32>
    %c0_8 = arith.constant 0 : index
    %c0_9 = arith.constant 0 : index
    %c0_10 = arith.constant 0 : index
    %19 = vector.load %arg1[%c0_8, %c0_9, %c0_10] : memref<1x32x1xf32, #tpu.memory_space<vmem>>, vector<1x32x1xf32>
    %20 = arith.mulf %18, %19 : vector<1x32x1xf32>
    %21 = vector.broadcast %6 : vector<1x32x1xf32> to vector<8x32x49xf32>
    %22 = arith.subf %0, %21 : vector<8x32x49xf32>
    %23 = vector.broadcast %20 : vector<1x32x1xf32> to vector<8x32x49xf32>
    %24 = arith.mulf %22, %23 : vector<8x32x49xf32>
    %c0_11 = arith.constant 0 : index
    %c0_12 = arith.constant 0 : index
    %c0_13 = arith.constant 0 : index
    %25 = vector.load %arg2[%c0_11, %c0_12, %c0_13] : memref<1x32x1xf32, #tpu.memory_space<vmem>>, vector<1x32x1xf32>
    %26 = vector.broadcast %25 : vector<1x32x1xf32> to vector<8x32x49xf32>
    %27 = arith.addf %24, %26 : vector<8x32x49xf32>
    %28 = arith.negf %27 : vector<8x32x49xf32>
    %29 = math.exp %28 : vector<8x32x49xf32>
    %cst_14 = arith.constant 1.000000e+00 : f32
    %30 = vector.broadcast %cst_14 : f32 to vector<8x32x49xf32>
    %31 = arith.addf %30, %29 : vector<8x32x49xf32>
    %32 = arith.divf %30, %31 : vector<8x32x49xf32>
    %cst_15 = arith.constant dense<0.000000e+00> : vector<8x32xf32>
    %33 = vector.multi_reduction <add>, %32, %cst_15 [2] : vector<8x32x49xf32> to vector<8x32xf32>
    %34 = vector.shape_cast %33 : vector<8x32xf32> to vector<8x32x1xf32>
    %cst_16 = arith.constant dense<0.000000e+00> : vector<32x1xf32>
    %35 = vector.multi_reduction <add>, %34, %cst_16 [0] : vector<8x32x1xf32> to vector<32x1xf32>
    %36 = vector.shape_cast %35 : vector<32x1xf32> to vector<1x32x1xf32>
    %cst_17 = arith.constant 0.00255102036 : f32
    %37 = vector.broadcast %cst_17 : f32 to vector<1x32x1xf32>
    %38 = arith.mulf %36, %37 : vector<1x32x1xf32>
    %39 = arith.mulf %32, %32 : vector<8x32x49xf32>
    %cst_18 = arith.constant dense<0.000000e+00> : vector<8x32xf32>
    %40 = vector.multi_reduction <add>, %39, %cst_18 [2] : vector<8x32x49xf32> to vector<8x32xf32>
    %41 = vector.shape_cast %40 : vector<8x32xf32> to vector<8x32x1xf32>
    %cst_19 = arith.constant dense<0.000000e+00> : vector<32x1xf32>
    %42 = vector.multi_reduction <add>, %41, %cst_19 [0] : vector<8x32x1xf32> to vector<32x1xf32>
    %43 = vector.shape_cast %42 : vector<32x1xf32> to vector<1x32x1xf32>
    %cst_20 = arith.constant 0.00255102036 : f32
    %44 = vector.broadcast %cst_20 : f32 to vector<1x32x1xf32>
    %45 = arith.mulf %43, %44 : vector<1x32x1xf32>
    %46 = arith.mulf %38, %38 : vector<1x32x1xf32>
    %47 = arith.subf %45, %46 : vector<1x32x1xf32>
    %cst_21 = arith.constant 0.00999999977 : f32
    %48 = vector.broadcast %cst_21 : f32 to vector<1x32x1xf32>
    %49 = arith.addf %47, %48 : vector<1x32x1xf32>
    %50 = math.rsqrt %49 : vector<1x32x1xf32>
    %c0_22 = arith.constant 0 : index
    %c0_23 = arith.constant 0 : index
    %c0_24 = arith.constant 0 : index
    %51 = vector.load %arg3[%c0_22, %c0_23, %c0_24] : memref<1x32x1xf32, #tpu.memory_space<vmem>>, vector<1x32x1xf32>
    %52 = arith.mulf %50, %51 : vector<1x32x1xf32>
    %53 = vector.broadcast %38 : vector<1x32x1xf32> to vector<8x32x49xf32>
    %54 = arith.subf %32, %53 : vector<8x32x49xf32>
    %55 = vector.broadcast %52 : vector<1x32x1xf32> to vector<8x32x49xf32>
    %56 = arith.mulf %54, %55 : vector<8x32x49xf32>
    %c0_25 = arith.constant 0 : index
    %c0_26 = arith.constant 0 : index
    %c0_27 = arith.constant 0 : index
    %57 = vector.load %arg4[%c0_25, %c0_26, %c0_27] : memref<1x32x1xf32, #tpu.memory_space<vmem>>, vector<1x32x1xf32>
    %58 = vector.broadcast %57 : vector<1x32x1xf32> to vector<8x32x49xf32>
    %59 = arith.addf %56, %58 : vector<8x32x49xf32>
    %60 = arith.negf %59 : vector<8x32x49xf32>
    %61 = math.exp %60 : vector<8x32x49xf32>
    %cst_28 = arith.constant 1.000000e+00 : f32
    %62 = vector.broadcast %cst_28 : f32 to vector<8x32x49xf32>
    %63 = arith.addf %62, %61 : vector<8x32x49xf32>
    %64 = arith.divf %62, %63 : vector<8x32x49xf32>
    %c0_29 = arith.constant 0 : index
    %c0_30 = arith.constant 0 : index
    %c0_31 = arith.constant 0 : index
    %65 = vector.load %arg5[%c0_29, %c0_30, %c0_31] : memref<8x32x49xf32, #tpu.memory_space<vmem>>, vector<8x32x49xf32>
    tpu.vector_store %arg5[%c0_29, %c0_30, %c0_31], %64 {strides = array<i32>} : memref<8x32x49xf32, #tpu.memory_space<vmem>>, vector<8x32x49xf32>,
    return
  }
}

</mosaic_0001>

<llo_original>
// kernel: model_forward.1
$region0: #{model_forward.1}
  #allocation0 [shape = 'u32[]', space=smem, size = 0x4, offset = 0x4, fixed_abs, tag = 'smem constant byte address 0x4 - core index']
  #allocation1 [shape = 'u32[72,128]{1,0:T(1,128)}', space=vmem, size = 0x9000, scoped, tag = 'internal scratch']
  %s0 = inlined_call_operand.vmem [shape: f32[8,32,49], index: 0, kind: input, shape index: {}]
  %s1 = inlined_call_operand.vmem [shape: f32[1,32,1], index: 1, kind: input, shape index: {}]
  %s2 = inlined_call_operand.vmem [shape: f32[1,32,1], index: 2, kind: input, shape index: {}]
  %s3 = inlined_call_operand.vmem [shape: f32[1,32,1], index: 3, kind: input, shape index: {}]
  %s4 = inlined_call_operand.vmem [shape: f32[1,32,1], index: 4, kind: input, shape index: {}]
  %s5 = inlined_call_operand.vmem [shape: f32[8,32,49], index: 5, kind: output, shape index: {}]
  %s6 = sld [smem:[#allocation0]]
  $region30: #{model_forward.1} parent=0
    _
  %s8 = ssub.s32 1, %s6
  %s9 = scalar_select 0, %s8, %s6
  // Predicated region
  $region2: #{model_forward.1} parent=0 // pred_check
    _
  $region3: #{model_forward.1} parent=0 // pred_check_branch
    %11 = sbr.rel (0) target = $region5
  $region4: #{model_forward.1} parent=0 // pred_region
    _
  $region5: #{model_forward.1} parent=0 // pred_fallthru
    _
  // Predicated region
  $region6: #{model_forward.1} parent=0 // pred_check
    _
  $region7: #{model_forward.1} parent=0 // pred_check_branch
    %13 = sbr.rel (0) target = $region9
  $region8: #{model_forward.1} parent=0 // pred_region
    _
  $region9: #{model_forward.1} parent=0 // pred_fallthru
    _
  // Predicated region
  $region10: #{model_forward.1} parent=0 // pred_check
    _
  $region11: #{model_forward.1} parent=0 // pred_check_branch
    %15 = sbr.rel (0) target = $region13
  $region12: #{model_forward.1} parent=0 // pred_region
    _
  $region13: #{model_forward.1} parent=0 // pred_fallthru
    _
  // Predicated region
  $region14: #{model_forward.1} parent=0 // pred_check
    _
  $region15: #{model_forward.1} parent=0 // pred_check_branch
    %17 = sbr.rel (0) target = $region17
  $region16: #{model_forward.1} parent=0 // pred_region
    _
  $region17: #{model_forward.1} parent=0 // pred_fallthru
    _
  // Predicated region
  $region18: #{model_forward.1} parent=0 // pred_check
    _
  $region19: #{model_forward.1} parent=0 // pred_check_branch
    %19 = sbr.rel (0) target = $region21
  $region20: #{model_forward.1} parent=0 // pred_region
    _
  $region21: #{model_forward.1} parent=0 // pred_fallthru
    _
  %v20 = vld [vmem:[%s0] sm:$0xff]
  %v21 = vld [vmem:[%s0 + $0x8] sm:$0xff]
  %v22 = vld [vmem:[%s0 + $0x10] sm:$0xff]
  %v23 = vld [vmem:[%s0 + $0x18] sm:$0xff]
  %v24 = vld [vmem:[%s0 + $0x20] sm:$0xff]
  %v25 = vld [vmem:[%s0 + $0x28] sm:$0xff]
  %v26 = vld [vmem:[%s0 + $0x30] sm:$0xff]
  %v27 = vld [vmem:[%s0 + $0x38] sm:$0xff]
  %v28 = vld [vmem:[%s0 + $0x40] sm:$0xff]
  %v29 = vld [vmem:[%s0 + $0x48] sm:$0xff]
  %v30 = vld [vmem:[%s0 + $0x50] sm:$0xff]
  %v31 = vld [vmem:[%s0 + $0x58] sm:$0xff]
  %v32 = vld [vmem:[%s0 + $0x60] sm:$0xff]
  %v33 = vld [vmem:[%s0 + $0x68] sm:$0xff]
  %v34 = vld [vmem:[%s0 + $0x70] sm:$0xff]
  %v35 = vld [vmem:[%s0 + $0x78] sm:$0xff]
  %v36 = vld [vmem:[%s0 + $0x80] sm:$0xff]
  %v37 = vld [vmem:[%s0 + $0x88] sm:$0xff]
  %v38 = vld [vmem:[%s0 + $0x90] sm:$0xff]
  %v39 = vld [vmem:[%s0 + $0x98] sm:$0xff]
  %v40 = vld [vmem:[%s0 + $0xa0] sm:$0xff]
  %v41 = vld [vmem:[%s0 + $0xa8] sm:$0xff]
  %v42 = vld [vmem:[%s0 + $0xb0] sm:$0xff]
  %v43 = vld [vmem:[%s0 + $0xb8] sm:$0xff]
  %v44 = vld [vmem:[%s0 + $0xc0] sm:$0xff]
  %v45 = vld [vmem:[%s0 + $0xc8] sm:$0xff]
  %v46 = vld [vmem:[%s0 + $0xd0] sm:$0xff]
  %v47 = vld [vmem:[%s0 + $0xd8] sm:$0xff]
  %v48 = vld [vmem:[%s0 + $0xe0] sm:$0xff]
  %v49 = vld [vmem:[%s0 + $0xe8] sm:$0xff]
  %v50 = vld [vmem:[%s0 + $0xf0] sm:$0xff]
  %v51 = vld [vmem:[%s0 + $0xf8] sm:$0xff]
  %vm52 = vcmask 400384
  %v53 = vsel %vm52, %v20, 0.0
  %54 = vadd.xlane.f32.xlu0 %v53
  %v55 = vpop.xlane.xlu0 %54
  %v56 = vsel %vm52, %v21, 0.0
  %57 = vadd.xlane.f32.xlu0 %v56
  %v58 = vpop.xlane.xlu0 %57
  %v59 = vsel %vm52, %v22, 0.0
  %60 = vadd.xlane.f32.xlu0 %v59
  %v61 = vpop.xlane.xlu0 %60
  %v62 = vsel %vm52, %v23, 0.0
  %63 = vadd.xlane.f32.xlu0 %v62
  %v64 = vpop.xlane.xlu0 %63
  %v65 = vsel %vm52, %v24, 0.0
  %66 = vadd.xlane.f32.xlu0 %v65
  %v67 = vpop.xlane.xlu0 %66
  %v68 = vsel %vm52, %v25, 0.0
  %69 = vadd.xlane.f32.xlu0 %v68
  %v70 = vpop.xlane.xlu0 %69
  %v71 = vsel %vm52, %v26, 0.0
  %72 = vadd.xlane.f32.xlu0 %v71
  %v73 = vpop.xlane.xlu0 %72
  %v74 = vsel %vm52, %v27, 0.0
  %75 = vadd.xlane.f32.xlu0 %v74
  %v76 = vpop.xlane.xlu0 %75
  %v77 = vsel %vm52, %v28, 0.0
  %78 = vadd.xlane.f32.xlu0 %v77
  %v79 = vpop.xlane.xlu0 %78
  %v80 = vsel %vm52, %v29, 0.0
  %81 = vadd.xlane.f32.xlu0 %v80
  %v82 = vpop.xlane.xlu0 %81
  %v83 = vsel %vm52, %v30, 0.0
  %84 = vadd.xlane.f32.xlu0 %v83
  %v85 = vpop.xlane.xlu0 %84
  %v86 = vsel %vm52, %v31, 0.0
  %87 = vadd.xlane.f32.xlu0 %v86
  %v88 = vpop.xlane.xlu0 %87
  %v89 = vsel %vm52, %v32, 0.0
  %90 = vadd.xlane.f32.xlu0 %v89
  %v91 = vpop.xlane.xlu0 %90
  %v92 = vsel %vm52, %v33, 0.0
  %93 = vadd.xlane.f32.xlu0 %v92
  %v94 = vpop.xlane.xlu0 %93
  %v95 = vsel %vm52, %v34, 0.0
  %96 = vadd.xlane.f32.xlu0 %v95
  %v97 = vpop.xlane.xlu0 %96
  %v98 = vsel %vm52, %v35, 0.0
  %99 = vadd.xlane.f32.xlu0 %v98
  %v100 = vpop.xlane.xlu0 %99
  %v101 = vsel %vm52, %v36, 0.0
  %102 = vadd.xlane.f32.xlu0 %v101
  %v103 = vpop.xlane.xlu0 %102
  %v104 = vsel %vm52, %v37, 0.0
  %105 = vadd.xlane.f32.xlu0 %v104
  %v106 = vpop.xlane.xlu0 %105
  %v107 = vsel %vm52, %v38, 0.0
  %108 = vadd.xlane.f32.xlu0 %v107
  %v109 = vpop.xlane.xlu0 %108
  %v110 = vsel %vm52, %v39, 0.0
  %111 = vadd.xlane.f32.xlu0 %v110
  %v112 = vpop.xlane.xlu0 %111
  %v113 = vsel %vm52, %v40, 0.0
  %114 = vadd.xlane.f32.xlu0 %v113
  %v115 = vpop.xlane.xlu0 %114
  %v116 = vsel %vm52, %v41, 0.0
  %117 = vadd.xlane.f32.xlu0 %v116
  %v118 = vpop.xlane.xlu0 %117
  %v119 = vsel %vm52, %v42, 0.0
  %120 = vadd.xlane.f32.xlu0 %v119
  %v121 = vpop.xlane.xlu0 %120
  %v122 = vsel %vm52, %v43, 0.0
  %123 = vadd.xlane.f32.xlu0 %v122
  %v124 = vpop.xlane.xlu0 %123
  %v125 = vsel %vm52, %v44, 0.0
  %126 = vadd.xlane.f32.xlu0 %v125
  %v127 = vpop.xlane.xlu0 %126
  %v128 = vsel %vm52, %v45, 0.0
  %129 = vadd.xlane.f32.xlu0 %v128
  %v130 = vpop.xlane.xlu0 %129
  %v131 = vsel %vm52, %v46, 0.0
  %132 = vadd.xlane.f32.xlu0 %v131
  %v133 = vpop.xlane.xlu0 %132
  %v134 = vsel %vm52, %v47, 0.0
  %135 = vadd.xlane.f32.xlu0 %v134
  %v136 = vpop.xlane.xlu0 %135
  %v137 = vsel %vm52, %v48, 0.0
  %138 = vadd.xlane.f32.xlu0 %v137
  %v139 = vpop.xlane.xlu0 %138
  %v140 = vsel %vm52, %v49, 0.0
  %141 = vadd.xlane.f32.xlu0 %v140
  %v142 = vpop.xlane.xlu0 %141
  %v143 = vsel %vm52, %v50, 0.0
  %144 = vadd.xlane.f32.xlu0 %v143
  %v145 = vpop.xlane.xlu0 %144
  %v146 = vsel %vm52, %v51, 0.0
  %147 = vadd.xlane.f32.xlu0 %v146
  %v148 = vpop.xlane.xlu0 %147
  %v149 = vadd.f32 %v55, %v67
  %v150 = vadd.f32 %v149, %v79
  %v151 = vadd.f32 %v150, %v91
  %v152 = vadd.f32 %v151, %v103
  %v153 = vadd.f32 %v152, %v115
  %v154 = vadd.f32 %v153, %v127
  %v155 = vadd.f32 %v154, %v139
  %v156 = vadd.f32 %v58, %v70
  %v157 = vadd.f32 %v156, %v82
  %v158 = vadd.f32 %v157, %v94
  %v159 = vadd.f32 %v158, %v106
  %v160 = vadd.f32 %v159, %v118
  %v161 = vadd.f32 %v160, %v130
  %v162 = vadd.f32 %v161, %v142
  %v163 = vadd.f32 %v61, %v73
  %v164 = vadd.f32 %v163, %v85
  %v165 = vadd.f32 %v164, %v97
  %v166 = vadd.f32 %v165, %v109
  %v167 = vadd.f32 %v166, %v121
  %v168 = vadd.f32 %v167, %v133
  %v169 = vadd.f32 %v168, %v145
  %v170 = vadd.f32 %v64, %v76
  %v171 = vadd.f32 %v170, %v88
  %v172 = vadd.f32 %v171, %v100
  %v173 = vadd.f32 %v172, %v112
  %v174 = vadd.f32 %v173, %v124
  %v175 = vadd.f32 %v174, %v136
  %v176 = vadd.f32 %v175, %v148
  %v177 = vmul.f32 %v155, 0.0025510204
  %v178 = vmul.f32 %v162, 0.0025510204
  %v179 = vmul.f32 %v169, 0.0025510204
  %v180 = vmul.f32 %v176, 0.0025510204
  %v181 = vmul.f32 %v20, %v20
  %v182 = vmul.f32 %v21, %v21
  %v183 = vmul.f32 %v22, %v22
  %v184 = vmul.f32 %v23, %v23
  %v185 = vmul.f32 %v24, %v24
  %v186 = vmul.f32 %v25, %v25
  %v187 = vmul.f32 %v26, %v26
  %v188 = vmul.f32 %v27, %v27
  %v189 = vmul.f32 %v28, %v28
  %v190 = vmul.f32 %v29, %v29
  %v191 = vmul.f32 %v30, %v30
  %v192 = vmul.f32 %v31, %v31
  %v193 = vmul.f32 %v32, %v32
  %v194 = vmul.f32 %v33, %v33
  %v195 = vmul.f32 %v34, %v34
  %v196 = vmul.f32 %v35, %v35
  %v197 = vmul.f32 %v36, %v36
  %v198 = vmul.f32 %v37, %v37
  %v199 = vmul.f32 %v38, %v38
  %v200 = vmul.f32 %v39, %v39
  %v201 = vmul.f32 %v40, %v40
  %v202 = vmul.f32 %v41, %v41
  %v203 = vmul.f32 %v42, %v42
  %v204 = vmul.f32 %v43, %v43
  %v205 = vmul.f32 %v44, %v44
  %v206 = vmul.f32 %v45, %v45
  %v207 = vmul.f32 %v46, %v46
  %v208 = vmul.f32 %v47, %v47
  %v209 = vmul.f32 %v48, %v48
  %v210 = vmul.f32 %v49, %v49
  %v211 = vmul.f32 %v50, %v50
  %v212 = vmul.f32 %v51, %v51
  %v213 = vsel %vm52, %v181, 0.0
  %214 = vadd.xlane.f32.xlu0 %v213
  %v215 = vpop.xlane.xlu0 %214
  %v216 = vsel %vm52, %v182, 0.0
  %217 = vadd.xlane.f32.xlu0 %v216
  %v218 = vpop.xlane.xlu0 %217
  %v219 = vsel %vm52, %v183, 0.0
  %220 = vadd.xlane.f32.xlu0 %v219
  %v221 = vpop.xlane.xlu0 %220
  %v222 = vsel %vm52, %v184, 0.0
  %223 = vadd.xlane.f32.xlu0 %v222
  %v224 = vpop.xlane.xlu0 %223
  %v225 = vsel %vm52, %v185, 0.0
  %226 = vadd.xlane.f32.xlu0 %v225
  %v227 = vpop.xlane.xlu0 %226
  %v228 = vsel %vm52, %v186, 0.0
  %229 = vadd.xlane.f32.xlu0 %v228
  %v230 = vpop.xlane.xlu0 %229
  %v231 = vsel %vm52, %v187, 0.0
  %232 = vadd.xlane.f32.xlu0 %v231
  %v233 = vpop.xlane.xlu0 %232
  %v234 = vsel %vm52, %v188, 0.0
  %235 = vadd.xlane.f32.xlu0 %v234
  %v236 = vpop.xlane.xlu0 %235
  %v237 = vsel %vm52, %v189, 0.0
  %238 = vadd.xlane.f32.xlu0 %v237
  %v239 = vpop.xlane.xlu0 %238
  %v240 = vsel %vm52, %v190, 0.0
  %241 = vadd.xlane.f32.xlu0 %v240
  %v242 = vpop.xlane.xlu0 %241
  %v243 = vsel %vm52, %v191, 0.0
  %244 = vadd.xlane.f32.xlu0 %v243
  %v245 = vpop.xlane.xlu0 %244
  %v246 = vsel %vm52, %v192, 0.0
  %247 = vadd.xlane.f32.xlu0 %v246
  %v248 = vpop.xlane.xlu0 %247
  %v249 = vsel %vm52, %v193, 0.0
  %250 = vadd.xlane.f32.xlu0 %v249
  %v251 = vpop.xlane.xlu0 %250
  %v252 = vsel %vm52, %v194, 0.0
  %253 = vadd.xlane.f32.xlu0 %v252
  %v254 = vpop.xlane.xlu0 %253
  %v255 = vsel %vm52, %v195, 0.0
  %256 = vadd.xlane.f32.xlu0 %v255
  %v257 = vpop.xlane.xlu0 %256
  %v258 = vsel %vm52, %v196, 0.0
  %259 = vadd.xlane.f32.xlu0 %v258
  %v260 = vpop.xlane.xlu0 %259
  %v261 = vsel %vm52, %v197, 0.0
  %262 = vadd.xlane.f32.xlu0 %v261
  %v263 = vpop.xlane.xlu0 %262
  %v264 = vsel %vm52, %v198, 0.0
  %265 = vadd.xlane.f32.xlu0 %v264
  %v266 = vpop.xlane.xlu0 %265
  %v267 = vsel %vm52, %v199, 0.0
  %268 = vadd.xlane.f32.xlu0 %v267
  %v269 = vpop.xlane.xlu0 %268
  %v270 = vsel %vm52, %v200, 0.0
  %271 = vadd.xlane.f32.xlu0 %v270
  %v272 = vpop.xlane.xlu0 %271
  %v273 = vsel %vm52, %v201, 0.0
  %274 = vadd.xlane.f32.xlu0 %v273
  %v275 = vpop.xlane.xlu0 %274
  %v276 = vsel %vm52, %v202, 0.0
  %277 = vadd.xlane.f32.xlu0 %v276
  %v278 = vpop.xlane.xlu0 %277
  %v279 = vsel %vm52, %v203, 0.0
  %280 = vadd.xlane.f32.xlu0 %v279
  %v281 = vpop.xlane.xlu0 %280
  %v282 = vsel %vm52, %v204, 0.0
  %283 = vadd.xlane.f32.xlu0 %v282
  %v284 = vpop.xlane.xlu0 %283
  %v285 = vsel %vm52, %v205, 0.0
  %286 = vadd.xlane.f32.xlu0 %v285
  %v287 = vpop.xlane.xlu0 %286
  %v288 = vsel %vm52, %v206, 0.0
  %289 = vadd.xlane.f32.xlu0 %v288
  %v290 = vpop.xlane.xlu0 %289
  %v291 = vsel %vm52, %v207, 0.0
  %292 = vadd.xlane.f32.xlu0 %v291
  %v293 = vpop.xlane.xlu0 %292
  %v294 = vsel %vm52, %v208, 0.0
  %295 = vadd.xlane.f32.xlu0 %v294
  %v296 = vpop.xlane.xlu0 %295
  %v297 = vsel %vm52, %v209, 0.0
  %298 = vadd.xlane.f32.xlu0 %v297
  %v299 = vpop.xlane.xlu0 %298
  %v300 = vsel %vm52, %v210, 0.0
  %301 = vadd.xlane.f32.xlu0 %v300
  %v302 = vpop.xlane.xlu0 %301
  %v303 = vsel %vm52, %v211, 0.0
  %304 = vadd.xlane.f32.xlu0 %v303
  %v305 = vpop.xlane.xlu0 %304
  %v306 = vsel %vm52, %v212, 0.0
  %307 = vadd.xlane.f32.xlu0 %v306
  %v308 = vpop.xlane.xlu0 %307
  %v309 = vadd.f32 %v215, %v227
  %v310 = vadd.f32 %v309, %v239
  %v311 = vadd.f32 %v310, %v251
  %v312 = vadd.f32 %v311, %v263
  %v313 = vadd.f32 %v312, %v275
  %v314 = vadd.f32 %v313, %v287
  %v315 = vadd.f32 %v314, %v299
  %v316 = vadd.f32 %v218, %v230
  %v317 = vadd.f32 %v316, %v242
  %v318 = vadd.f32 %v317, %v254
  %v319 = vadd.f32 %v318, %v266
  %v320 = vadd.f32 %v319, %v278
  %v321 = vadd.f32 %v320, %v290
  %v322 = vadd.f32 %v321, %v302
  %v323 = vadd.f32 %v221, %v233
  %v324 = vadd.f32 %v323, %v245
  %v325 = vadd.f32 %v324, %v257
  %v326 = vadd.f32 %v325, %v269
  %v327 = vadd.f32 %v326, %v281
  %v328 = vadd.f32 %v327, %v293
  %v329 = vadd.f32 %v328, %v305
  %v330 = vadd.f32 %v224, %v236
  %v331 = vadd.f32 %v330, %v248
  %v332 = vadd.f32 %v331, %v260
  %v333 = vadd.f32 %v332, %v272
  %v334 = vadd.f32 %v333, %v284
  %v335 = vadd.f32 %v334, %v296
  %v336 = vadd.f32 %v335, %v308
  %v337 = vmul.f32 %v315, 0.0025510204
  %v338 = vmul.f32 %v322, 0.0025510204
  %v339 = vmul.f32 %v329, 0.0025510204
  %v340 = vmul.f32 %v336, 0.0025510204
  %v341 = vmul.f32 %v177, %v177
  %v342 = vmul.f32 %v178, %v178
  %v343 = vmul.f32 %v179, %v179
  %v344 = vmul.f32 %v180, %v180
  %v345 = vsub.f32 %v337, %v341
  %v346 = vsub.f32 %v338, %v342
  %v347 = vsub.f32 %v339, %v343
  %v348 = vsub.f32 %v340, %v344
  %v349 = vadd.f32 %v345, 0.05
  %v350 = vadd.f32 %v346, 0.05
  %v351 = vadd.f32 %v347, 0.05
  %v352 = vadd.f32 %v348, 0.05
  %v353 = vrsqrt.pop %v349
  %v354 = vmul.f32 %v353, %v349
  %v355 = vmul.f32 %v354, %v353
  %v356 = vmul.f32 0.5, %v355
  %v357 = vsub.f32 1.5, %v356
  %v358 = vmul.f32 %v353, %v357
  %vm359 = vweird.f32 %v349
  %vm360 = vweird.f32 %v353
  %vm361 = vmor %vm359, %vm360
  %v362 = vsel %vm361, %v353, %v358
  %v363 = vrsqrt.pop %v350
  %v364 = vmul.f32 %v363, %v350
  %v365 = vmul.f32 %v364, %v363
  %v366 = vmul.f32 0.5, %v365
  %v367 = vsub.f32 1.5, %v366
  %v368 = vmul.f32 %v363, %v367
  %vm369 = vweird.f32 %v350
  %vm370 = vweird.f32 %v363
  %vm371 = vmor %vm369, %vm370
  %v372 = vsel %vm371, %v363, %v368
  %v373 = vrsqrt.pop %v351
  %v374 = vmul.f32 %v373, %v351
  %v375 = vmul.f32 %v374, %v373
  %v376 = vmul.f32 0.5, %v375
  %v377 = vsub.f32 1.5, %v376
  %v378 = vmul.f32 %v373, %v377
  %vm379 = vweird.f32 %v351
  %vm380 = vweird.f32 %v373
  %vm381 = vmor %vm379, %vm380
  %v382 = vsel %vm381, %v373, %v378
  %v383 = vrsqrt.pop %v352
  %v384 = vmul.f32 %v383, %v352
  %v385 = vmul.f32 %v384, %v383
  %v386 = vmul.f32 0.5, %v385
  %v387 = vsub.f32 1.5, %v386
  %v388 = vmul.f32 %v383, %v387
  %vm389 = vweird.f32 %v352
  %vm390 = vweird.f32 %v383
  %vm391 = vmor %vm389, %vm390
  %v392 = vsel %vm391, %v383, %v388
  %v393 = vld [vmem:[%s1] sm:$0xff]
  %v394 = vld [vmem:[%s1 + $0x8] sm:$0xff]
  %v395 = vld [vmem:[%s1 + $0x10] sm:$0xff]
  %v396 = vld [vmem:[%s1 + $0x18] sm:$0xff]
  %v397 = vmul.f32 %v362, %v393
  %v398 = vmul.f32 %v372, %v394
  %v399 = vmul.f32 %v382, %v395
  %v400 = vmul.f32 %v392, %v396
  %v401 = vsub.f32 %v20, %v177
  %v402 = vsub.f32 %v21, %v178
  %v403 = vsub.f32 %v22, %v179
  %v404 = vsub.f32 %v23, %v180
  %v405 = vsub.f32 %v24, %v177
  %v406 = vsub.f32 %v25, %v178
  %v407 = vsub.f32 %v26, %v179
  %v408 = vsub.f32 %v27, %v180
  %v409 = vsub.f32 %v28, %v177
  %v410 = vsub.f32 %v29, %v178
  %v411 = vsub.f32 %v30, %v179
  %v412 = vsub.f32 %v31, %v180
  %v413 = vsub.f32 %v32, %v177
  %v414 = vsub.f32 %v33, %v178
  %v415 = vsub.f32 %v34, %v179
  %v416 = vsub.f32 %v35, %v180
  %v417 = vsub.f32 %v36, %v177
  %v418 = vsub.f32 %v37, %v178
  %v419 = vsub.f32 %v38, %v179
  %v420 = vsub.f32 %v39, %v180
  %v421 = vsub.f32 %v40, %v177
  %v422 = vsub.f32 %v41, %v178
  %v423 = vsub.f32 %v42, %v179
  %v424 = vsub.f32 %v43, %v180
  %v425 = vsub.f32 %v44, %v177
  %v426 = vsub.f32 %v45, %v178
  %v427 = vsub.f32 %v46, %v179
  %v428 = vsub.f32 %v47, %v180
  %v429 = vsub.f32 %v48, %v177
  %v430 = vsub.f32 %v49, %v178
  %v431 = vsub.f32 %v50, %v179
  %v432 = vsub.f32 %v51, %v180
  %434 = vset.pattern.permute.xlu0 0
  %435 = vperm.xlu0 %434, %v397
  %v436 = vpop.permute.xlu0 %435
  %439 = vset.pattern.permute.xlu0 0
  %440 = vperm.xlu0 %439, %v398
  %v441 = vpop.permute.xlu0 %440
  %444 = vset.pattern.permute.xlu0 0
  %445 = vperm.xlu0 %444, %v399
  %v446 = vpop.permute.xlu0 %445
  %449 = vset.pattern.permute.xlu0 0
  %450 = vperm.xlu0 %449, %v400
  %v451 = vpop.permute.xlu0 %450
  %v453 = vmul.f32 %v401, %v436
  %v454 = vmul.f32 %v402, %v441
  %v455 = vmul.f32 %v403, %v446
  %v456 = vmul.f32 %v404, %v451
  %v457 = vmul.f32 %v405, %v436
  %v458 = vmul.f32 %v406, %v441
  %v459 = vmul.f32 %v407, %v446
  %v460 = vmul.f32 %v408, %v451
  %v461 = vmul.f32 %v409, %v436
  %v462 = vmul.f32 %v410, %v441
  %v463 = vmul.f32 %v411, %v446
  %v464 = vmul.f32 %v412, %v451
  %v465 = vmul.f32 %v413, %v436
  %v466 = vmul.f32 %v414, %v441
  %v467 = vmul.f32 %v415, %v446
  %v468 = vmul.f32 %v416, %v451
  %v469 = vmul.f32 %v417, %v436
  %v470 = vmul.f32 %v418, %v441
  %v471 = vmul.f32 %v419, %v446
  %v472 = vmul.f32 %v420, %v451
  %v473 = vmul.f32 %v421, %v436
  %v474 = vmul.f32 %v422, %v441
  %v475 = vmul.f32 %v423, %v446
  %v476 = vmul.f32 %v424, %v451
  %v477 = vmul.f32 %v425, %v436
  %v478 = vmul.f32 %v426, %v441
  %v479 = vmul.f32 %v427, %v446
  %v480 = vmul.f32 %v428, %v451
  %v481 = vmul.f32 %v429, %v436
  %v482 = vmul.f32 %v430, %v441
  %v483 = vmul.f32 %v431, %v446
  %v484 = vmul.f32 %v432, %v451
  %v485 = vld [vmem:[%s2] sm:$0xff]
  %v486 = vld [vmem:[%s2 + $0x8] sm:$0xff]
  %v487 = vld [vmem:[%s2 + $0x10] sm:$0xff]
  %v488 = vld [vmem:[%s2 + $0x18] sm:$0xff]
  %490 = vset.pattern.permute.xlu0 0
  %491 = vperm.xlu0 %490, %v485
  %v492 = vpop.permute.xlu0 %491
  %495 = vset.pattern.permute.xlu0 0
  %496 = vperm.xlu0 %495, %v486
  %v497 = vpop.permute.xlu0 %496
  %500 = vset.pattern.permute.xlu0 0
  %501 = vperm.xlu0 %500, %v487
  %v502 = vpop.permute.xlu0 %501
  %505 = vset.pattern.permute.xlu0 0
  %506 = vperm.xlu0 %505, %v488
  %v507 = vpop.permute.xlu0 %506
  %v509 = vadd.f32 %v453, %v492
  %v510 = vadd.f32 %v454, %v497
  %v511 = vadd.f32 %v455, %v502
  %v512 = vadd.f32 %v456, %v507
  %v513 = vadd.f32 %v457, %v492
  %v514 = vadd.f32 %v458, %v497
  %v515 = vadd.f32 %v459, %v502
  %v516 = vadd.f32 %v460, %v507
  %v517 = vadd.f32 %v461, %v492
  %v518 = vadd.f32 %v462, %v497
  %v519 = vadd.f32 %v463, %v502
  %v520 = vadd.f32 %v464, %v507
  %v521 = vadd.f32 %v465, %v492
  %v522 = vadd.f32 %v466, %v497
  %v523 = vadd.f32 %v467, %v502
  %v524 = vadd.f32 %v468, %v507
  %v525 = vadd.f32 %v469, %v492
  %v526 = vadd.f32 %v470, %v497
  %v527 = vadd.f32 %v471, %v502
  %v528 = vadd.f32 %v472, %v507
  %v529 = vadd.f32 %v473, %v492
  %v530 = vadd.f32 %v474, %v497
  %v531 = vadd.f32 %v475, %v502
  %v532 = vadd.f32 %v476, %v507
  %v533 = vadd.f32 %v477, %v492
  %v534 = vadd.f32 %v478, %v497
  %v535 = vadd.f32 %v479, %v502
  %v536 = vadd.f32 %v480, %v507
  %v537 = vadd.f32 %v481, %v492
  %v538 = vadd.f32 %v482, %v497
  %v539 = vadd.f32 %v483, %v502
  %v540 = vadd.f32 %v484, %v507
  %v541 = vxor.u32 %v509, 2147483648
  %v542 = vxor.u32 %v510, 2147483648
  %v543 = vxor.u32 %v511, 2147483648
  %v544 = vxor.u32 %v512, 2147483648
  %v545 = vxor.u32 %v513, 2147483648
  %v546 = vxor.u32 %v514, 2147483648
  %v547 = vxor.u32 %v515, 2147483648
  %v548 = vxor.u32 %v516, 2147483648
  %v549 = vxor.u32 %v517, 2147483648
  %v550 = vxor.u32 %v518, 2147483648
  %v551 = vxor.u32 %v519, 2147483648
  %v552 = vxor.u32 %v520, 2147483648
  %v553 = vxor.u32 %v521, 2147483648
  %v554 = vxor.u32 %v522, 2147483648
  %v555 = vxor.u32 %v523, 2147483648
  %v556 = vxor.u32 %v524, 2147483648
  %v557 = vxor.u32 %v525, 2147483648
  %v558 = vxor.u32 %v526, 2147483648
  %v559 = vxor.u32 %v527, 2147483648
  %v560 = vxor.u32 %v528, 2147483648
  %v561 = vxor.u32 %v529, 2147483648
  %v562 = vxor.u32 %v530, 2147483648
  %v563 = vxor.u32 %v531, 2147483648
  %v564 = vxor.u32 %v532, 2147483648
  %v565 = vxor.u32 %v533, 2147483648
  %v566 = vxor.u32 %v534, 2147483648
  %v567 = vxor.u32 %v535, 2147483648
  %v568 = vxor.u32 %v536, 2147483648
  %v569 = vxor.u32 %v537, 2147483648
  %v570 = vxor.u32 %v538, 2147483648
  %v571 = vxor.u32 %v539, 2147483648
  %v572 = vxor.u32 %v540, 2147483648
  %v573 = vmul.f32 %v541, 1.442695
  %v574 = vpow.pop %v573
  %v575 = vmul.f32 %v542, 1.442695
  %v576 = vpow.pop %v575
  %v577 = vmul.f32 %v543, 1.442695
  %v578 = vpow.pop %v577
  %v579 = vmul.f32 %v544, 1.442695
  %v580 = vpow.pop %v579
  %v581 = vmul.f32 %v545, 1.442695
  %v582 = vpow.pop %v581
  %v583 = vmul.f32 %v546, 1.442695
  %v584 = vpow.pop %v583
  %v585 = vmul.f32 %v547, 1.442695
  %v586 = vpow.pop %v585
  %v587 = vmul.f32 %v548, 1.442695
  %v588 = vpow.pop %v587
  %v589 = vmul.f32 %v549, 1.442695
  %v590 = vpow.pop %v589
  %v591 = vmul.f32 %v550, 1.442695
  %v592 = vpow.pop %v591
  %v593 = vmul.f32 %v551, 1.442695
  %v594 = vpow.pop %v593
  %v595 = vmul.f32 %v552, 1.442695
  %v596 = vpow.pop %v595
  %v597 = vmul.f32 %v553, 1.442695
  %v598 = vpow.pop %v597
  %v599 = vmul.f32 %v554, 1.442695
  %v600 = vpow.pop %v599
  %v601 = vmul.f32 %v555, 1.442695
  %v602 = vpow.pop %v601
  %v603 = vmul.f32 %v556, 1.442695
  %v604 = vpow.pop %v603
  %v605 = vmul.f32 %v557, 1.442695
  %v606 = vpow.pop %v605
  %v607 = vmul.f32 %v558, 1.442695
  %v608 = vpow.pop %v607
  %v609 = vmul.f32 %v559, 1.442695
  %v610 = vpow.pop %v609
  %v611 = vmul.f32 %v560, 1.442695
  %v612 = vpow.pop %v611
  %v613 = vmul.f32 %v561, 1.442695
  %v614 = vpow.pop %v613
  %v615 = vmul.f32 %v562, 1.442695
  %v616 = vpow.pop %v615
  %v617 = vmul.f32 %v563, 1.442695
  %v618 = vpow.pop %v617
  %v619 = vmul.f32 %v564, 1.442695
  %v620 = vpow.pop %v619
  %v621 = vmul.f32 %v565, 1.442695
  %v622 = vpow.pop %v621
  %v623 = vmul.f32 %v566, 1.442695
  %v624 = vpow.pop %v623
  %v625 = vmul.f32 %v567, 1.442695
  %v626 = vpow.pop %v625
  %v627 = vmul.f32 %v568, 1.442695
  %v628 = vpow.pop %v627
  %v629 = vmul.f32 %v569, 1.442695
  %v630 = vpow.pop %v629
  %v631 = vmul.f32 %v570, 1.442695
  %v632 = vpow.pop %v631
  %v633 = vmul.f32 %v571, 1.442695
  %v634 = vpow.pop %v633
  %v635 = vmul.f32 %v572, 1.442695
  %v636 = vpow.pop %v635
  %v637 = vadd.f32 %v574, 1.0
  %v638 = vadd.f32 %v576, 1.0
  %v639 = vadd.f32 %v578, 1.0
  %v640 = vadd.f32 %v580, 1.0
  %v641 = vadd.f32 %v582, 1.0
  %v642 = vadd.f32 %v584, 1.0
  %v643 = vadd.f32 %v586, 1.0
  %v644 = vadd.f32 %v588, 1.0
  %v645 = vadd.f32 %v590, 1.0
  %v646 = vadd.f32 %v592, 1.0
  %v647 = vadd.f32 %v594, 1.0
  %v648 = vadd.f32 %v596, 1.0
  %v649 = vadd.f32 %v598, 1.0
  %v650 = vadd.f32 %v600, 1.0
  %v651 = vadd.f32 %v602, 1.0
  %v652 = vadd.f32 %v604, 1.0
  %v653 = vadd.f32 %v606, 1.0
  %v654 = vadd.f32 %v608, 1.0
  %v655 = vadd.f32 %v610, 1.0
  %v656 = vadd.f32 %v612, 1.0
  %v657 = vadd.f32 %v614, 1.0
  %v658 = vadd.f32 %v616, 1.0
  %v659 = vadd.f32 %v618, 1.0
  %v660 = vadd.f32 %v620, 1.0
  %v661 = vadd.f32 %v622, 1.0
  %v662 = vadd.f32 %v624, 1.0
  %v663 = vadd.f32 %v626, 1.0
  %v664 = vadd.f32 %v628, 1.0
  %v665 = vadd.f32 %v630, 1.0
  %v666 = vadd.f32 %v632, 1.0
  %v667 = vadd.f32 %v634, 1.0
  %v668 = vadd.f32 %v636, 1.0
  %v669 = vrcp.pop %v637
  %v670 = vmul.f32 %v637, %v669
  %v671 = vsub.f32 1.0, %v670
  %v672 = vmul.f32 %v669, %v671
  %v673 = vadd.f32 %v669, %v672
  %vm674 = vweird.f32 %v637
  %vm675 = vweird.f32 %v669
  %vm676 = vmor %vm674, %vm675
  %v677 = vsel %vm676, %v669, %v673
  %v678 = vand.u32 2147483647, %v637
  %vm679 = vcmp.eq.f32.partialorder %v678, 8.507059e+37
  %v680 = vand.u32 %v637, 2147483648
  %v681 = vor.u32 1.1754944e-38, %v680
  %v682 = vsel %vm679, %v681, %v677
  %v683 = vmul.f32 1.0, %v682
  %v684 = vrcp.pop %v638
  %v685 = vmul.f32 %v638, %v684
  %v686 = vsub.f32 1.0, %v685
  %v687 = vmul.f32 %v684, %v686
  %v688 = vadd.f32 %v684, %v687
  %vm689 = vweird.f32 %v638
  %vm690 = vweird.f32 %v684
  %vm691 = vmor %vm689, %vm690
  %v692 = vsel %vm691, %v684, %v688
  %v693 = vand.u32 2147483647, %v638
  %vm694 = vcmp.eq.f32.partialorder %v693, 8.507059e+37
  %v695 = vand.u32 %v638, 2147483648
  %v696 = vor.u32 1.1754944e-38, %v695
  %v697 = vsel %vm694, %v696, %v692
  %v698 = vmul.f32 1.0, %v697
  %v699 = vrcp.pop %v639
  %v700 = vmul.f32 %v639, %v699
  %v701 = vsub.f32 1.0, %v700
  %v702 = vmul.f32 %v699, %v701
  %v703 = vadd.f32 %v699, %v702
  %vm704 = vweird.f32 %v639
  %vm705 = vweird.f32 %v699
  %vm706 = vmor %vm704, %vm705
  %v707 = vsel %vm706, %v699, %v703
  %v708 = vand.u32 2147483647, %v639
  %vm709 = vcmp.eq.f32.partialorder %v708, 8.507059e+37
  %v710 = vand.u32 %v639, 2147483648
  %v711 = vor.u32 1.1754944e-38, %v710
  %v712 = vsel %vm709, %v711, %v707
  %v713 = vmul.f32 1.0, %v712
  %v714 = vrcp.pop %v640
  %v715 = vmul.f32 %v640, %v714
  %v716 = vsub.f32 1.0, %v715
  %v717 = vmul.f32 %v714, %v716
  %v718 = vadd.f32 %v714, %v717
  %vm719 = vweird.f32 %v640
  %vm720 = vweird.f32 %v714
  %vm721 = vmor %vm719, %vm720
  %v722 = vsel %vm721, %v714, %v718
  %v723 = vand.u32 2147483647, %v640
  %vm724 = vcmp.eq.f32.partialorder %v723, 8.507059e+37
  %v725 = vand.u32 %v640, 2147483648
  %v726 = vor.u32 1.1754944e-38, %v725
  %v727 = vsel %vm724, %v726, %v722
  %v728 = vmul.f32 1.0, %v727
  %v729 = vrcp.pop %v641
  %v730 = vmul.f32 %v641, %v729
  %v731 = vsub.f32 1.0, %v730
  %v732 = vmul.f32 %v729, %v731
  %v733 = vadd.f32 %v729, %v732
  %vm734 = vweird.f32 %v641
  %vm735 = vweird.f32 %v729
  %vm736 = vmor %vm734, %vm735
  %v737 = vsel %vm736, %v729, %v733
  %v738 = vand.u32 2147483647, %v641
  %vm739 = vcmp.eq.f32.partialorder %v738, 8.507059e+37
  %v740 = vand.u32 %v641, 2147483648
  %v741 = vor.u32 1.1754944e-38, %v740
  %v742 = vsel %vm739, %v741, %v737
  %v743 = vmul.f32 1.0, %v742
  %v744 = vrcp.pop %v642
  %v745 = vmul.f32 %v642, %v744
  %v746 = vsub.f32 1.0, %v745
  %v747 = vmul.f32 %v744, %v746
  %v748 = vadd.f32 %v744, %v747
  %vm749 = vweird.f32 %v642
  %vm750 = vweird.f32 %v744
  %vm751 = vmor %vm749, %vm750
  %v752 = vsel %vm751, %v744, %v748
  %v753 = vand.u32 2147483647, %v642
  %vm754 = vcmp.eq.f32.partialorder %v753, 8.507059e+37
  %v755 = vand.u32 %v642, 2147483648
  %v756 = vor.u32 1.1754944e-38, %v755
  %v757 = vsel %vm754, %v756, %v752
  %v758 = vmul.f32 1.0, %v757
  %v759 = vrcp.pop %v643
  %v760 = vmul.f32 %v643, %v759
  %v761 = vsub.f32 1.0, %v760
  %v762 = vmul.f32 %v759, %v761
  %v763 = vadd.f32 %v759, %v762
  %vm764 = vweird.f32 %v643
  %vm765 = vweird.f32 %v759
  %vm766 = vmor %vm764, %vm765
  %v767 = vsel %vm766, %v759, %v763
  %v768 = vand.u32 2147483647, %v643
  %vm769 = vcmp.eq.f32.partialorder %v768, 8.507059e+37
  %v770 = vand.u32 %v643, 2147483648
  %v771 = vor.u32 1.1754944e-38, %v770
  %v772 = vsel %vm769, %v771, %v767
  %v773 = vmul.f32 1.0, %v772
  %v774 = vrcp.pop %v644
  %v775 = vmul.f32 %v644, %v774
  %v776 = vsub.f32 1.0, %v775
  %v777 = vmul.f32 %v774, %v776
  %v778 = vadd.f32 %v774, %v777
  %vm779 = vweird.f32 %v644
  %vm780 = vweird.f32 %v774
  %vm781 = vmor %vm779, %vm780
  %v782 = vsel %vm781, %v774, %v778
  %v783 = vand.u32 2147483647, %v644
  %vm784 = vcmp.eq.f32.partialorder %v783, 8.507059e+37
  %v785 = vand.u32 %v644, 2147483648
  %v786 = vor.u32 1.1754944e-38, %v785
  %v787 = vsel %vm784, %v786, %v782
  %v788 = vmul.f32 1.0, %v787
  %v789 = vrcp.pop %v645
  %v790 = vmul.f32 %v645, %v789
  %v791 = vsub.f32 1.0, %v790
  %v792 = vmul.f32 %v789, %v791
  %v793 = vadd.f32 %v789, %v792
  %vm794 = vweird.f32 %v645
  %vm795 = vweird.f32 %v789
  %vm796 = vmor %vm794, %vm795
  %v797 = vsel %vm796, %v789, %v793
  %v798 = vand.u32 2147483647, %v645
  %vm799 = vcmp.eq.f32.partialorder %v798, 8.507059e+37
  %v800 = vand.u32 %v645, 2147483648
  %v801 = vor.u32 1.1754944e-38, %v800
  %v802 = vsel %vm799, %v801, %v797
  %v803 = vmul.f32 1.0, %v802
  %v804 = vrcp.pop %v646
  %v805 = vmul.f32 %v646, %v804
  %v806 = vsub.f32 1.0, %v805
  %v807 = vmul.f32 %v804, %v806
  %v808 = vadd.f32 %v804, %v807
  %vm809 = vweird.f32 %v646
  %vm810 = vweird.f32 %v804
  %vm811 = vmor %vm809, %vm810
  %v812 = vsel %vm811, %v804, %v808
  %v813 = vand.u32 2147483647, %v646
  %vm814 = vcmp.eq.f32.partialorder %v813, 8.507059e+37
  %v815 = vand.u32 %v646, 2147483648
  %v816 = vor.u32 1.1754944e-38, %v815
  %v817 = vsel %vm814, %v816, %v812
  %v818 = vmul.f32 1.0, %v817
  %v819 = vrcp.pop %v647
  %v820 = vmul.f32 %v647, %v819
  %v821 = vsub.f32 1.0, %v820
  %v822 = vmul.f32 %v819, %v821
  %v823 = vadd.f32 %v819, %v822
  %vm824 = vweird.f32 %v647
  %vm825 = vweird.f32 %v819
  %vm826 = vmor %vm824, %vm825
  %v827 = vsel %vm826, %v819, %v823
  %v828 = vand.u32 2147483647, %v647
  %vm829 = vcmp.eq.f32.partialorder %v828, 8.507059e+37
  %v830 = vand.u32 %v647, 2147483648
  %v831 = vor.u32 1.1754944e-38, %v830
  %v832 = vsel %vm829, %v831, %v827
  %v833 = vmul.f32 1.0, %v832
  %v834 = vrcp.pop %v648
  %v835 = vmul.f32 %v648, %v834
  %v836 = vsub.f32 1.0, %v835
  %v837 = vmul.f32 %v834, %v836
  %v838 = vadd.f32 %v834, %v837
  %vm839 = vweird.f32 %v648
  %vm840 = vweird.f32 %v834
  %vm841 = vmor %vm839, %vm840
  %v842 = vsel %vm841, %v834, %v838
  %v843 = vand.u32 2147483647, %v648
  %vm844 = vcmp.eq.f32.partialorder %v843, 8.507059e+37
  %v845 = vand.u32 %v648, 2147483648
  %v846 = vor.u32 1.1754944e-38, %v845
  %v847 = vsel %vm844, %v846, %v842
  %v848 = vmul.f32 1.0, %v847
  %v849 = vrcp.pop %v649
  %v850 = vmul.f32 %v649, %v849
  %v851 = vsub.f32 1.0, %v850
  %v852 = vmul.f32 %v849, %v851
  %v853 = vadd.f32 %v849, %v852
  %vm854 = vweird.f32 %v649
  %vm855 = vweird.f32 %v849
  %vm856 = vmor %vm854, %vm855
  %v857 = vsel %vm856, %v849, %v853
  %v858 = vand.u32 2147483647, %v649
  %vm859 = vcmp.eq.f32.partialorder %v858, 8.507059e+37
  %v860 = vand.u32 %v649, 2147483648
  %v861 = vor.u32 1.1754944e-38, %v860
  %v862 = vsel %vm859, %v861, %v857
  %v863 = vmul.f32 1.0, %v862
  %v864 = vrcp.pop %v650
  %v865 = vmul.f32 %v650, %v864
  %v866 = vsub.f32 1.0, %v865
  %v867 = vmul.f32 %v864, %v866
  %v868 = vadd.f32 %v864, %v867
  %vm869 = vweird.f32 %v650
  %vm870 = vweird.f32 %v864
  %vm871 = vmor %vm869, %vm870
  %v872 = vsel %vm871, %v864, %v868
  %v873 = vand.u32 2147483647, %v650
  %vm874 = vcmp.eq.f32.partialorder %v873, 8.507059e+37
  %v875 = vand.u32 %v650, 2147483648
  %v876 = vor.u32 1.1754944e-38, %v875
  %v877 = vsel %vm874, %v876, %v872
  %v878 = vmul.f32 1.0, %v877
  %v879 = vrcp.pop %v651
  %v880 = vmul.f32 %v651, %v879
  %v881 = vsub.f32 1.0, %v880
  %v882 = vmul.f32 %v879, %v881
  %v883 = vadd.f32 %v879, %v882
  %vm884 = vweird.f32 %v651
  %vm885 = vweird.f32 %v879
  %vm886 = vmor %vm884, %vm885
  %v887 = vsel %vm886, %v879, %v883
  %v888 = vand.u32 2147483647, %v651
  %vm889 = vcmp.eq.f32.partialorder %v888, 8.507059e+37
  %v890 = vand.u32 %v651, 2147483648
  %v891 = vor.u32 1.1754944e-38, %v890
  %v892 = vsel %vm889, %v891, %v887
  %v893 = vmul.f32 1.0, %v892
  %v894 = vrcp.pop %v652
  %v895 = vmul.f32 %v652, %v894
  %v896 = vsub.f32 1.0, %v895
  %v897 = vmul.f32 %v894, %v896
  %v898 = vadd.f32 %v894, %v897
  %vm899 = vweird.f32 %v652
  %vm900 = vweird.f32 %v894
  %vm901 = vmor %vm899, %vm900
  %v902 = vsel %vm901, %v894, %v898
  %v903 = vand.u32 2147483647, %v652
  %vm904 = vcmp.eq.f32.partialorder %v903, 8.507059e+37
  %v905 = vand.u32 %v652, 2147483648
  %v906 = vor.u32 1.1754944e-38, %v905
  %v907 = vsel %vm904, %v906, %v902
  %v908 = vmul.f32 1.0, %v907
  %v909 = vrcp.pop %v653
  %v910 = vmul.f32 %v653, %v909
  %v911 = vsub.f32 1.0, %v910
  %v912 = vmul.f32 %v909, %v911
  %v913 = vadd.f32 %v909, %v912
  %vm914 = vweird.f32 %v653
  %vm915 = vweird.f32 %v909
  %vm916 = vmor %vm914, %vm915
  %v917 = vsel %vm916, %v909, %v913
  %v918 = vand.u32 2147483647, %v653
  %vm919 = vcmp.eq.f32.partialorder %v918, 8.507059e+37
  %v920 = vand.u32 %v653, 2147483648
  %v921 = vor.u32 1.1754944e-38, %v920
  %v922 = vsel %vm919, %v921, %v917
  %v923 = vmul.f32 1.0, %v922
  %v924 = vrcp.pop %v654
  %v925 = vmul.f32 %v654, %v924
  %v926 = vsub.f32 1.0, %v925
  %v927 = vmul.f32 %v924, %v926
  %v928 = vadd.f32 %v924, %v927
  %vm929 = vweird.f32 %v654
  %vm930 = vweird.f32 %v924
  %vm931 = vmor %vm929, %vm930
  %v932 = vsel %vm931, %v924, %v928
  %v933 = vand.u32 2147483647, %v654
  %vm934 = vcmp.eq.f32.partialorder %v933, 8.507059e+37
  %v935 = vand.u32 %v654, 2147483648
  %v936 = vor.u32 1.1754944e-38, %v935
  %v937 = vsel %vm934, %v936, %v932
  %v938 = vmul.f32 1.0, %v937
  %v939 = vrcp.pop %v655
  %v940 = vmul.f32 %v655, %v939
  %v941 = vsub.f32 1.0, %v940
  %v942 = vmul.f32 %v939, %v941
  %v943 = vadd.f32 %v939, %v942
  %vm944 = vweird.f32 %v655
  %vm945 = vweird.f32 %v939
  %vm946 = vmor %vm944, %vm945
  %v947 = vsel %vm946, %v939, %v943
  %v948 = vand.u32 2147483647, %v655
  %vm949 = vcmp.eq.f32.partialorder %v948, 8.507059e+37
  %v950 = vand.u32 %v655, 2147483648
  %v951 = vor.u32 1.1754944e-38, %v950
  %v952 = vsel %vm949, %v951, %v947
  %v953 = vmul.f32 1.0, %v952
  %v954 = vrcp.pop %v656
  %v955 = vmul.f32 %v656, %v954
  %v956 = vsub.f32 1.0, %v955
  %v957 = vmul.f32 %v954, %v956
  %v958 = vadd.f32 %v954, %v957
  %vm959 = vweird.f32 %v656
  %vm960 = vweird.f32 %v954
  %vm961 = vmor %vm959, %vm960
  %v962 = vsel %vm961, %v954, %v958
  %v963 = vand.u32 2147483647, %v656
  %vm964 = vcmp.eq.f32.partialorder %v963, 8.507059e+37
  %v965 = vand.u32 %v656, 2147483648
  %v966 = vor.u32 1.1754944e-38, %v965
  %v967 = vsel %vm964, %v966, %v962
  %v968 = vmul.f32 1.0, %v967
  %v969 = vrcp.pop %v657
  %v970 = vmul.f32 %v657, %v969
  %v971 = vsub.f32 1.0, %v970
  %v972 = vmul.f32 %v969, %v971
  %v973 = vadd.f32 %v969, %v972
  %vm974 = vweird.f32 %v657
  %vm975 = vweird.f32 %v969
  %vm976 = vmor %vm974, %vm975
  %v977 = vsel %vm976, %v969, %v973
  %v978 = vand.u32 2147483647, %v657
  %vm979 = vcmp.eq.f32.partialorder %v978, 8.507059e+37
  %v980 = vand.u32 %v657, 2147483648
  %v981 = vor.u32 1.1754944e-38, %v980
  %v982 = vsel %vm979, %v981, %v977
  %v983 = vmul.f32 1.0, %v982
  %v984 = vrcp.pop %v658
  %v985 = vmul.f32 %v658, %v984
  %v986 = vsub.f32 1.0, %v985
  %v987 = vmul.f32 %v984, %v986
  %v988 = vadd.f32 %v984, %v987
  %vm989 = vweird.f32 %v658
  %vm990 = vweird.f32 %v984
  %vm991 = vmor %vm989, %vm990
  %v992 = vsel %vm991, %v984, %v988
  %v993 = vand.u32 2147483647, %v658
  %vm994 = vcmp.eq.f32.partialorder %v993, 8.507059e+37
  %v995 = vand.u32 %v658, 2147483648
  %v996 = vor.u32 1.1754944e-38, %v995
  %v997 = vsel %vm994, %v996, %v992
  %v998 = vmul.f32 1.0, %v997
  %v999 = vrcp.pop %v659
  %v1000 = vmul.f32 %v659, %v999
  %v1001 = vsub.f32 1.0, %v1000
  %v1002 = vmul.f32 %v999, %v1001
  %v1003 = vadd.f32 %v999, %v1002
  %vm1004 = vweird.f32 %v659
  %vm1005 = vweird.f32 %v999
  %vm1006 = vmor %vm1004, %vm1005
  %v1007 = vsel %vm1006, %v999, %v1003
  %v1008 = vand.u32 2147483647, %v659
  %vm1009 = vcmp.eq.f32.partialorder %v1008, 8.507059e+37
  %v1010 = vand.u32 %v659, 2147483648
  %v1011 = vor.u32 1.1754944e-38, %v1010
  %v1012 = vsel %vm1009, %v1011, %v1007
  %v1013 = vmul.f32 1.0, %v1012
  %v1014 = vrcp.pop %v660
  %v1015 = vmul.f32 %v660, %v1014
  %v1016 = vsub.f32 1.0, %v1015
  %v1017 = vmul.f32 %v1014, %v1016
  %v1018 = vadd.f32 %v1014, %v1017
  %vm1019 = vweird.f32 %v660
  %vm1020 = vweird.f32 %v1014
  %vm1021 = vmor %vm1019, %vm1020
  %v1022 = vsel %vm1021, %v1014, %v1018
  %v1023 = vand.u32 2147483647, %v660
  %vm1024 = vcmp.eq.f32.partialorder %v1023, 8.507059e+37
  %v1025 = vand.u32 %v660, 2147483648
  %v1026 = vor.u32 1.1754944e-38, %v1025
  %v1027 = vsel %vm1024, %v1026, %v1022
  %v1028 = vmul.f32 1.0, %v1027
  %v1029 = vrcp.pop %v661
  %v1030 = vmul.f32 %v661, %v1029
  %v1031 = vsub.f32 1.0, %v1030
  %v1032 = vmul.f32 %v1029, %v1031
  %v1033 = vadd.f32 %v1029, %v1032
  %vm1034 = vweird.f32 %v661
  %vm1035 = vweird.f32 %v1029
  %vm1036 = vmor %vm1034, %vm1035
  %v1037 = vsel %vm1036, %v1029, %v1033
  %v1038 = vand.u32 2147483647, %v661
  %vm1039 = vcmp.eq.f32.partialorder %v1038, 8.507059e+37
  %v1040 = vand.u32 %v661, 2147483648
  %v1041 = vor.u32 1.1754944e-38, %v1040
  %v1042 = vsel %vm1039, %v1041, %v1037
  %v1043 = vmul.f32 1.0, %v1042
  %v1044 = vrcp.pop %v662
  %v1045 = vmul.f32 %v662, %v1044
  %v1046 = vsub.f32 1.0, %v1045
  %v1047 = vmul.f32 %v1044, %v1046
  %v1048 = vadd.f32 %v1044, %v1047
  %vm1049 = vweird.f32 %v662
  %vm1050 = vweird.f32 %v1044
  %vm1051 = vmor %vm1049, %vm1050
  %v1052 = vsel %vm1051, %v1044, %v1048
  %v1053 = vand.u32 2147483647, %v662
  %vm1054 = vcmp.eq.f32.partialorder %v1053, 8.507059e+37
  %v1055 = vand.u32 %v662, 2147483648
  %v1056 = vor.u32 1.1754944e-38, %v1055
  %v1057 = vsel %vm1054, %v1056, %v1052
  %v1058 = vmul.f32 1.0, %v1057
  %v1059 = vrcp.pop %v663
  %v1060 = vmul.f32 %v663, %v1059
  %v1061 = vsub.f32 1.0, %v1060
  %v1062 = vmul.f32 %v1059, %v1061
  %v1063 = vadd.f32 %v1059, %v1062
  %vm1064 = vweird.f32 %v663
  %vm1065 = vweird.f32 %v1059
  %vm1066 = vmor %vm1064, %vm1065
  %v1067 = vsel %vm1066, %v1059, %v1063
  %v1068 = vand.u32 2147483647, %v663
  %vm1069 = vcmp.eq.f32.partialorder %v1068, 8.507059e+37
  %v1070 = vand.u32 %v663, 2147483648
  %v1071 = vor.u32 1.1754944e-38, %v1070
  %v1072 = vsel %vm1069, %v1071, %v1067
  %v1073 = vmul.f32 1.0, %v1072
  %v1074 = vrcp.pop %v664
  %v1075 = vmul.f32 %v664, %v1074
  %v1076 = vsub.f32 1.0, %v1075
  %v1077 = vmul.f32 %v1074, %v1076
  %v1078 = vadd.f32 %v1074, %v1077
  %vm1079 = vweird.f32 %v664
  %vm1080 = vweird.f32 %v1074
  %vm1081 = vmor %vm1079, %vm1080
  %v1082 = vsel %vm1081, %v1074, %v1078
  %v1083 = vand.u32 2147483647, %v664
  %vm1084 = vcmp.eq.f32.partialorder %v1083, 8.507059e+37
  %v1085 = vand.u32 %v664, 2147483648
  %v1086 = vor.u32 1.1754944e-38, %v1085
  %v1087 = vsel %vm1084, %v1086, %v1082
  %v1088 = vmul.f32 1.0, %v1087
  %v1089 = vrcp.pop %v665
  %v1090 = vmul.f32 %v665, %v1089
  %v1091 = vsub.f32 1.0, %v1090
  %v1092 = vmul.f32 %v1089, %v1091
  %v1093 = vadd.f32 %v1089, %v1092
  %vm1094 = vweird.f32 %v665
  %vm1095 = vweird.f32 %v1089
  %vm1096 = vmor %vm1094, %vm1095
  %v1097 = vsel %vm1096, %v1089, %v1093
  %v1098 = vand.u32 2147483647, %v665
  %vm1099 = vcmp.eq.f32.partialorder %v1098, 8.507059e+37
  %v1100 = vand.u32 %v665, 2147483648
  %v1101 = vor.u32 1.1754944e-38, %v1100
  %v1102 = vsel %vm1099, %v1101, %v1097
  %v1103 = vmul.f32 1.0, %v1102
  %v1104 = vrcp.pop %v666
  %v1105 = vmul.f32 %v666, %v1104
  %v1106 = vsub.f32 1.0, %v1105
  %v1107 = vmul.f32 %v1104, %v1106
  %v1108 = vadd.f32 %v1104, %v1107
  %vm1109 = vweird.f32 %v666
  %vm1110 = vweird.f32 %v1104
  %vm1111 = vmor %vm1109, %vm1110
  %v1112 = vsel %vm1111, %v1104, %v1108
  %v1113 = vand.u32 2147483647, %v666
  %vm1114 = vcmp.eq.f32.partialorder %v1113, 8.507059e+37
  %v1115 = vand.u32 %v666, 2147483648
  %v1116 = vor.u32 1.1754944e-38, %v1115
  %v1117 = vsel %vm1114, %v1116, %v1112
  %v1118 = vmul.f32 1.0, %v1117
  %v1119 = vrcp.pop %v667
  %v1120 = vmul.f32 %v667, %v1119
  %v1121 = vsub.f32 1.0, %v1120
  %v1122 = vmul.f32 %v1119, %v1121
  %v1123 = vadd.f32 %v1119, %v1122
  %vm1124 = vweird.f32 %v667
  %vm1125 = vweird.f32 %v1119
  %vm1126 = vmor %vm1124, %vm1125
  %v1127 = vsel %vm1126, %v1119, %v1123
  %v1128 = vand.u32 2147483647, %v667
  %vm1129 = vcmp.eq.f32.partialorder %v1128, 8.507059e+37
  %v1130 = vand.u32 %v667, 2147483648
  %v1131 = vor.u32 1.1754944e-38, %v1130
  %v1132 = vsel %vm1129, %v1131, %v1127
  %v1133 = vmul.f32 1.0, %v1132
  %v1134 = vrcp.pop %v668
  %v1135 = vmul.f32 %v668, %v1134
  %v1136 = vsub.f32 1.0, %v1135
  %v1137 = vmul.f32 %v1134, %v1136
  %v1138 = vadd.f32 %v1134, %v1137
  %vm1139 = vweird.f32 %v668
  %vm1140 = vweird.f32 %v1134
  %vm1141 = vmor %vm1139, %vm1140
  %v1142 = vsel %vm1141, %v1134, %v1138
  %v1143 = vand.u32 2147483647, %v668
  %vm1144 = vcmp.eq.f32.partialorder %v1143, 8.507059e+37
  %v1145 = vand.u32 %v668, 2147483648
  %v1146 = vor.u32 1.1754944e-38, %v1145
  %v1147 = vsel %vm1144, %v1146, %v1142
  %v1148 = vmul.f32 1.0, %v1147
  %v1149 = vsel %vm52, %v683, 0.0
  %1150 = vadd.xlane.f32.xlu0 %v1149
  %v1151 = vpop.xlane.xlu0 %1150
  %v1152 = vsel %vm52, %v698, 0.0
  %1153 = vadd.xlane.f32.xlu0 %v1152
  %v1154 = vpop.xlane.xlu0 %1153
  %v1155 = vsel %vm52, %v713, 0.0
  %1156 = vadd.xlane.f32.xlu0 %v1155
  %v1157 = vpop.xlane.xlu0 %1156
  %v1158 = vsel %vm52, %v728, 0.0
  %1159 = vadd.xlane.f32.xlu0 %v1158
  %v1160 = vpop.xlane.xlu0 %1159
  %v1161 = vsel %vm52, %v743, 0.0
  %1162 = vadd.xlane.f32.xlu0 %v1161
  %v1163 = vpop.xlane.xlu0 %1162
  %v1164 = vsel %vm52, %v758, 0.0
  %1165 = vadd.xlane.f32.xlu0 %v1164
  %v1166 = vpop.xlane.xlu0 %1165
  %v1167 = vsel %vm52, %v773, 0.0
  %1168 = vadd.xlane.f32.xlu0 %v1167
  %v1169 = vpop.xlane.xlu0 %1168
  %v1170 = vsel %vm52, %v788, 0.0
  %1171 = vadd.xlane.f32.xlu0 %v1170
  %v1172 = vpop.xlane.xlu0 %1171
  %v1173 = vsel %vm52, %v803, 0.0
  %1174 = vadd.xlane.f32.xlu0 %v1173
  %v1175 = vpop.xlane.xlu0 %1174
  %v1176 = vsel %vm52, %v818, 0.0
  %1177 = vadd.xlane.f32.xlu0 %v1176
  %v1178 = vpop.xlane.xlu0 %1177
  %v1179 = vsel %vm52, %v833, 0.0
  %1180 = vadd.xlane.f32.xlu0 %v1179
  %v1181 = vpop.xlane.xlu0 %1180
  %v1182 = vsel %vm52, %v848, 0.0
  %1183 = vadd.xlane.f32.xlu0 %v1182
  %v1184 = vpop.xlane.xlu0 %1183
  %v1185 = vsel %vm52, %v863, 0.0
  %1186 = vadd.xlane.f32.xlu0 %v1185
  %v1187 = vpop.xlane.xlu0 %1186
  %v1188 = vsel %vm52, %v878, 0.0
  %1189 = vadd.xlane.f32.xlu0 %v1188
  %v1190 = vpop.xlane.xlu0 %1189
  %v1191 = vsel %vm52, %v893, 0.0
  %1192 = vadd.xlane.f32.xlu0 %v1191
  %v1193 = vpop.xlane.xlu0 %1192
  %v1194 = vsel %vm52, %v908, 0.0
  %1195 = vadd.xlane.f32.xlu0 %v1194
  %v1196 = vpop.xlane.xlu0 %1195
  %v1197 = vsel %vm52, %v923, 0.0
  %1198 = vadd.xlane.f32.xlu0 %v1197
  %v1199 = vpop.xlane.xlu0 %1198
  %v1200 = vsel %vm52, %v938, 0.0
  %1201 = vadd.xlane.f32.xlu0 %v1200
  %v1202 = vpop.xlane.xlu0 %1201
  %v1203 = vsel %vm52, %v953, 0.0
  %1204 = vadd.xlane.f32.xlu0 %v1203
  %v1205 = vpop.xlane.xlu0 %1204
  %v1206 = vsel %vm52, %v968, 0.0
  %1207 = vadd.xlane.f32.xlu0 %v1206
  %v1208 = vpop.xlane.xlu0 %1207
  %v1209 = vsel %vm52, %v983, 0.0
  %1210 = vadd.xlane.f32.xlu0 %v1209
  %v1211 = vpop.xlane.xlu0 %1210
  %v1212 = vsel %vm52, %v998, 0.0
  %1213 = vadd.xlane.f32.xlu0 %v1212
  %v1214 = vpop.xlane.xlu0 %1213
  %v1215 = vsel %vm52, %v1013, 0.0
  %1216 = vadd.xlane.f32.xlu0 %v1215
  %v1217 = vpop.xlane.xlu0 %1216
  %v1218 = vsel %vm52, %v1028, 0.0
  %1219 = vadd.xlane.f32.xlu0 %v1218
  %v1220 = vpop.xlane.xlu0 %1219
  %v1221 = vsel %vm52, %v1043, 0.0
  %1222 = vadd.xlane.f32.xlu0 %v1221
  %v1223 = vpop.xlane.xlu0 %1222
  %v1224 = vsel %vm52, %v1058, 0.0
  %1225 = vadd.xlane.f32.xlu0 %v1224
  %v1226 = vpop.xlane.xlu0 %1225
  %v1227 = vsel %vm52, %v1073, 0.0
  %1228 = vadd.xlane.f32.xlu0 %v1227
  %v1229 = vpop.xlane.xlu0 %1228
  %v1230 = vsel %vm52, %v1088, 0.0
  %1231 = vadd.xlane.f32.xlu0 %v1230
  %v1232 = vpop.xlane.xlu0 %1231
  %v1233 = vsel %vm52, %v1103, 0.0
  %1234 = vadd.xlane.f32.xlu0 %v1233
  %v1235 = vpop.xlane.xlu0 %1234
  %v1236 = vsel %vm52, %v1118, 0.0
  %1237 = vadd.xlane.f32.xlu0 %v1236
  %v1238 = vpop.xlane.xlu0 %1237
  %v1239 = vsel %vm52, %v1133, 0.0
  %1240 = vadd.xlane.f32.xlu0 %v1239
  %v1241 = vpop.xlane.xlu0 %1240
  %v1242 = vsel %vm52, %v1148, 0.0
  %1243 = vadd.xlane.f32.xlu0 %v1242
  %v1244 = vpop.xlane.xlu0 %1243
  %v1245 = vadd.f32 %v1151, %v1163
  %v1246 = vadd.f32 %v1245, %v1175
  %v1247 = vadd.f32 %v1246, %v1187
  %v1248 = vadd.f32 %v1247, %v1199
  %v1249 = vadd.f32 %v1248, %v1211
  %v1250 = vadd.f32 %v1249, %v1223
  %v1251 = vadd.f32 %v1250, %v1235
  %v1252 = vadd.f32 %v1154, %v1166
  %v1253 = vadd.f32 %v1252, %v1178
  %v1254 = vadd.f32 %v1253, %v1190
  %v1255 = vadd.f32 %v1254, %v1202
  %v1256 = vadd.f32 %v1255, %v1214
  %v1257 = vadd.f32 %v1256, %v1226
  %v1258 = vadd.f32 %v1257, %v1238
  %v1259 = vadd.f32 %v1157, %v1169
  %v1260 = vadd.f32 %v1259, %v1181
  %v1261 = vadd.f32 %v1260, %v1193
  %v1262 = vadd.f32 %v1261, %v1205
  %v1263 = vadd.f32 %v1262, %v1217
  %v1264 = vadd.f32 %v1263, %v1229
  %v1265 = vadd.f32 %v1264, %v1241
  %v1266 = vadd.f32 %v1160, %v1172
  %v1267 = vadd.f32 %v1266, %v1184
  %v1268 = vadd.f32 %v1267, %v1196
  %v1269 = vadd.f32 %v1268, %v1208
  %v1270 = vadd.f32 %v1269, %v1220
  %v1271 = vadd.f32 %v1270, %v1232
  %v1272 = vadd.f32 %v1271, %v1244
  %v1273 = vmul.f32 %v1251, 0.0025510204
  %v1274 = vmul.f32 %v1258, 0.0025510204
  %v1275 = vmul.f32 %v1265, 0.0025510204
  %v1276 = vmul.f32 %v1272, 0.0025510204
  %v1277 = vmul.f32 %v683, %v683
  %v1278 = vmul.f32 %v698, %v698
  %v1279 = vmul.f32 %v713, %v713
  %v1280 = vmul.f32 %v728, %v728
  %v1281 = vmul.f32 %v743, %v743
  %v1282 = vmul.f32 %v758, %v758
  %v1283 = vmul.f32 %v773, %v773
  %v1284 = vmul.f32 %v788, %v788
  %v1285 = vmul.f32 %v803, %v803
  %v1286 = vmul.f32 %v818, %v818
  %v1287 = vmul.f32 %v833, %v833
  %v1288 = vmul.f32 %v848, %v848
  %v1289 = vmul.f32 %v863, %v863
  %v1290 = vmul.f32 %v878, %v878
  %v1291 = vmul.f32 %v893, %v893
  %v1292 = vmul.f32 %v908, %v908
  %v1293 = vmul.f32 %v923, %v923
  %v1294 = vmul.f32 %v938, %v938
  %v1295 = vmul.f32 %v953, %v953
  %v1296 = vmul.f32 %v968, %v968
  %v1297 = vmul.f32 %v983, %v983
  %v1298 = vmul.f32 %v998, %v998
  %v1299 = vmul.f32 %v1013, %v1013
  %v1300 = vmul.f32 %v1028, %v1028
  %v1301 = vmul.f32 %v1043, %v1043
  %v1302 = vmul.f32 %v1058, %v1058
  %v1303 = vmul.f32 %v1073, %v1073
  %v1304 = vmul.f32 %v1088, %v1088
  %v1305 = vmul.f32 %v1103, %v1103
  %v1306 = vmul.f32 %v1118, %v1118
  %v1307 = vmul.f32 %v1133, %v1133
  %v1308 = vmul.f32 %v1148, %v1148
  %v1309 = vsel %vm52, %v1277, 0.0
  %1310 = vadd.xlane.f32.xlu0 %v1309
  %v1311 = vpop.xlane.xlu0 %1310
  %v1312 = vsel %vm52, %v1278, 0.0
  %1313 = vadd.xlane.f32.xlu0 %v1312
  %v1314 = vpop.xlane.xlu0 %1313
  %v1315 = vsel %vm52, %v1279, 0.0
  %1316 = vadd.xlane.f32.xlu0 %v1315
  %v1317 = vpop.xlane.xlu0 %1316
  %v1318 = vsel %vm52, %v1280, 0.0
  %1319 = vadd.xlane.f32.xlu0 %v1318
  %v1320 = vpop.xlane.xlu0 %1319
  %v1321 = vsel %vm52, %v1281, 0.0
  %1322 = vadd.xlane.f32.xlu0 %v1321
  %v1323 = vpop.xlane.xlu0 %1322
  %v1324 = vsel %vm52, %v1282, 0.0
  %1325 = vadd.xlane.f32.xlu0 %v1324
  %v1326 = vpop.xlane.xlu0 %1325
  %v1327 = vsel %vm52, %v1283, 0.0
  %1328 = vadd.xlane.f32.xlu0 %v1327
  %v1329 = vpop.xlane.xlu0 %1328
  %v1330 = vsel %vm52, %v1284, 0.0
  %1331 = vadd.xlane.f32.xlu0 %v1330
  %v1332 = vpop.xlane.xlu0 %1331
  %v1333 = vsel %vm52, %v1285, 0.0
  %1334 = vadd.xlane.f32.xlu0 %v1333
  %v1335 = vpop.xlane.xlu0 %1334
  %v1336 = vsel %vm52, %v1286, 0.0
  %1337 = vadd.xlane.f32.xlu0 %v1336
  %v1338 = vpop.xlane.xlu0 %1337
  %v1339 = vsel %vm52, %v1287, 0.0
  %1340 = vadd.xlane.f32.xlu0 %v1339
  %v1341 = vpop.xlane.xlu0 %1340
  %v1342 = vsel %vm52, %v1288, 0.0
  %1343 = vadd.xlane.f32.xlu0 %v1342
  %v1344 = vpop.xlane.xlu0 %1343
  %v1345 = vsel %vm52, %v1289, 0.0
  %1346 = vadd.xlane.f32.xlu0 %v1345
  %v1347 = vpop.xlane.xlu0 %1346
  %v1348 = vsel %vm52, %v1290, 0.0
  %1349 = vadd.xlane.f32.xlu0 %v1348
  %v1350 = vpop.xlane.xlu0 %1349
  %v1351 = vsel %vm52, %v1291, 0.0
  %1352 = vadd.xlane.f32.xlu0 %v1351
  %v1353 = vpop.xlane.xlu0 %1352
  %v1354 = vsel %vm52, %v1292, 0.0
  %1355 = vadd.xlane.f32.xlu0 %v1354
  %v1356 = vpop.xlane.xlu0 %1355
  %v1357 = vsel %vm52, %v1293, 0.0
  %1358 = vadd.xlane.f32.xlu0 %v1357
  %v1359 = vpop.xlane.xlu0 %1358
  %v1360 = vsel %vm52, %v1294, 0.0
  %1361 = vadd.xlane.f32.xlu0 %v1360
  %v1362 = vpop.xlane.xlu0 %1361
  %v1363 = vsel %vm52, %v1295, 0.0
  %1364 = vadd.xlane.f32.xlu0 %v1363
  %v1365 = vpop.xlane.xlu0 %1364
  %v1366 = vsel %vm52, %v1296, 0.0
  %1367 = vadd.xlane.f32.xlu0 %v1366
  %v1368 = vpop.xlane.xlu0 %1367
  %v1369 = vsel %vm52, %v1297, 0.0
  %1370 = vadd.xlane.f32.xlu0 %v1369
  %v1371 = vpop.xlane.xlu0 %1370
  %v1372 = vsel %vm52, %v1298, 0.0
  %1373 = vadd.xlane.f32.xlu0 %v1372
  %v1374 = vpop.xlane.xlu0 %1373
  %v1375 = vsel %vm52, %v1299, 0.0
  %1376 = vadd.xlane.f32.xlu0 %v1375
  %v1377 = vpop.xlane.xlu0 %1376
  %v1378 = vsel %vm52, %v1300, 0.0
  %1379 = vadd.xlane.f32.xlu0 %v1378
  %v1380 = vpop.xlane.xlu0 %1379
  %v1381 = vsel %vm52, %v1301, 0.0
  %1382 = vadd.xlane.f32.xlu0 %v1381
  %v1383 = vpop.xlane.xlu0 %1382
  %v1384 = vsel %vm52, %v1302, 0.0
  %1385 = vadd.xlane.f32.xlu0 %v1384
  %v1386 = vpop.xlane.xlu0 %1385
  %v1387 = vsel %vm52, %v1303, 0.0
  %1388 = vadd.xlane.f32.xlu0 %v1387
  %v1389 = vpop.xlane.xlu0 %1388
  %v1390 = vsel %vm52, %v1304, 0.0
  %1391 = vadd.xlane.f32.xlu0 %v1390
  %v1392 = vpop.xlane.xlu0 %1391
  %v1393 = vsel %vm52, %v1305, 0.0
  %1394 = vadd.xlane.f32.xlu0 %v1393
  %v1395 = vpop.xlane.xlu0 %1394
  %v1396 = vsel %vm52, %v1306, 0.0
  %1397 = vadd.xlane.f32.xlu0 %v1396
  %v1398 = vpop.xlane.xlu0 %1397
  %v1399 = vsel %vm52, %v1307, 0.0
  %1400 = vadd.xlane.f32.xlu0 %v1399
  %v1401 = vpop.xlane.xlu0 %1400
  %v1402 = vsel %vm52, %v1308, 0.0
  %1403 = vadd.xlane.f32.xlu0 %v1402
  %v1404 = vpop.xlane.xlu0 %1403
  %v1405 = vadd.f32 %v1311, %v1323
  %v1406 = vadd.f32 %v1405, %v1335
  %v1407 = vadd.f32 %v1406, %v1347
  %v1408 = vadd.f32 %v1407, %v1359
  %v1409 = vadd.f32 %v1408, %v1371
  %v1410 = vadd.f32 %v1409, %v1383
  %v1411 = vadd.f32 %v1410, %v1395
  %v1412 = vadd.f32 %v1314, %v1326
  %v1413 = vadd.f32 %v1412, %v1338
  %v1414 = vadd.f32 %v1413, %v1350
  %v1415 = vadd.f32 %v1414, %v1362
  %v1416 = vadd.f32 %v1415, %v1374
  %v1417 = vadd.f32 %v1416, %v1386
  %v1418 = vadd.f32 %v1417, %v1398
  %v1419 = vadd.f32 %v1317, %v1329
  %v1420 = vadd.f32 %v1419, %v1341
  %v1421 = vadd.f32 %v1420, %v1353
  %v1422 = vadd.f32 %v1421, %v1365
  %v1423 = vadd.f32 %v1422, %v1377
  %v1424 = vadd.f32 %v1423, %v1389
  %v1425 = vadd.f32 %v1424, %v1401
  %v1426 = vadd.f32 %v1320, %v1332
  %v1427 = vadd.f32 %v1426, %v1344
  %v1428 = vadd.f32 %v1427, %v1356
  %v1429 = vadd.f32 %v1428, %v1368
  %v1430 = vadd.f32 %v1429, %v1380
  %v1431 = vadd.f32 %v1430, %v1392
  %v1432 = vadd.f32 %v1431, %v1404
  %v1433 = vmul.f32 %v1411, 0.0025510204
  %v1434 = vmul.f32 %v1418, 0.0025510204
  %v1435 = vmul.f32 %v1425, 0.0025510204
  %v1436 = vmul.f32 %v1432, 0.0025510204
  %v1437 = vmul.f32 %v1273, %v1273
  %v1438 = vmul.f32 %v1274, %v1274
  %v1439 = vmul.f32 %v1275, %v1275
  %v1440 = vmul.f32 %v1276, %v1276
  %v1441 = vsub.f32 %v1433, %v1437
  %v1442 = vsub.f32 %v1434, %v1438
  %v1443 = vsub.f32 %v1435, %v1439
  %v1444 = vsub.f32 %v1436, %v1440
  %v1445 = vadd.f32 %v1441, 0.01
  %v1446 = vadd.f32 %v1442, 0.01
  %v1447 = vadd.f32 %v1443, 0.01
  %v1448 = vadd.f32 %v1444, 0.01
  %v1449 = vrsqrt.pop %v1445
  %v1450 = vmul.f32 %v1449, %v1445
  %v1451 = vmul.f32 %v1450, %v1449
  %v1452 = vmul.f32 0.5, %v1451
  %v1453 = vsub.f32 1.5, %v1452
  %v1454 = vmul.f32 %v1449, %v1453
  %vm1455 = vweird.f32 %v1445
  %vm1456 = vweird.f32 %v1449
  %vm1457 = vmor %vm1455, %vm1456
  %v1458 = vsel %vm1457, %v1449, %v1454
  %v1459 = vrsqrt.pop %v1446
  %v1460 = vmul.f32 %v1459, %v1446
  %v1461 = vmul.f32 %v1460, %v1459
  %v1462 = vmul.f32 0.5, %v1461
  %v1463 = vsub.f32 1.5, %v1462
  %v1464 = vmul.f32 %v1459, %v1463
  %vm1465 = vweird.f32 %v1446
  %vm1466 = vweird.f32 %v1459
  %vm1467 = vmor %vm1465, %vm1466
  %v1468 = vsel %vm1467, %v1459, %v1464
  %v1469 = vrsqrt.pop %v1447
  %v1470 = vmul.f32 %v1469, %v1447
  %v1471 = vmul.f32 %v1470, %v1469
  %v1472 = vmul.f32 0.5, %v1471
  %v1473 = vsub.f32 1.5, %v1472
  %v1474 = vmul.f32 %v1469, %v1473
  %vm1475 = vweird.f32 %v1447
  %vm1476 = vweird.f32 %v1469
  %vm1477 = vmor %vm1475, %vm1476
  %v1478 = vsel %vm1477, %v1469, %v1474
  %v1479 = vrsqrt.pop %v1448
  %v1480 = vmul.f32 %v1479, %v1448
  %v1481 = vmul.f32 %v1480, %v1479
  %v1482 = vmul.f32 0.5, %v1481
  %v1483 = vsub.f32 1.5, %v1482
  %v1484 = vmul.f32 %v1479, %v1483
  %vm1485 = vweird.f32 %v1448
  %vm1486 = vweird.f32 %v1479
  %vm1487 = vmor %vm1485, %vm1486
  %v1488 = vsel %vm1487, %v1479, %v1484
  %v1489 = vld [vmem:[%s3] sm:$0xff]
  %v1490 = vld [vmem:[%s3 + $0x8] sm:$0xff]
  %v1491 = vld [vmem:[%s3 + $0x10] sm:$0xff]
  %v1492 = vld [vmem:[%s3 + $0x18] sm:$0xff]
  %v1493 = vmul.f32 %v1458, %v1489
  %v1494 = vmul.f32 %v1468, %v1490
  %v1495 = vmul.f32 %v1478, %v1491
  %v1496 = vmul.f32 %v1488, %v1492
  %v1497 = vsub.f32 %v683, %v1273
  %v1498 = vsub.f32 %v698, %v1274
  %v1499 = vsub.f32 %v713, %v1275
  %v1500 = vsub.f32 %v728, %v1276
  %v1501 = vsub.f32 %v743, %v1273
  %v1502 = vsub.f32 %v758, %v1274
  %v1503 = vsub.f32 %v773, %v1275
  %v1504 = vsub.f32 %v788, %v1276
  %v1505 = vsub.f32 %v803, %v1273
  %v1506 = vsub.f32 %v818, %v1274
  %v1507 = vsub.f32 %v833, %v1275
  %v1508 = vsub.f32 %v848, %v1276
  %v1509 = vsub.f32 %v863, %v1273
  %v1510 = vsub.f32 %v878, %v1274
  %v1511 = vsub.f32 %v893, %v1275
  %v1512 = vsub.f32 %v908, %v1276
  %v1513 = vsub.f32 %v923, %v1273
  %v1514 = vsub.f32 %v938, %v1274
  %v1515 = vsub.f32 %v953, %v1275
  %v1516 = vsub.f32 %v968, %v1276
  %v1517 = vsub.f32 %v983, %v1273
  %v1518 = vsub.f32 %v998, %v1274
  %v1519 = vsub.f32 %v1013, %v1275
  %v1520 = vsub.f32 %v1028, %v1276
  %v1521 = vsub.f32 %v1043, %v1273
  %v1522 = vsub.f32 %v1058, %v1274
  %v1523 = vsub.f32 %v1073, %v1275
  %v1524 = vsub.f32 %v1088, %v1276
  %v1525 = vsub.f32 %v1103, %v1273
  %v1526 = vsub.f32 %v1118, %v1274
  %v1527 = vsub.f32 %v1133, %v1275
  %v1528 = vsub.f32 %v1148, %v1276
  %1530 = vset.pattern.permute.xlu0 0
  %1531 = vperm.xlu0 %1530, %v1493
  %v1532 = vpop.permute.xlu0 %1531
  %1535 = vset.pattern.permute.xlu0 0
  %1536 = vperm.xlu0 %1535, %v1494
  %v1537 = vpop.permute.xlu0 %1536
  %1540 = vset.pattern.permute.xlu0 0
  %1541 = vperm.xlu0 %1540, %v1495
  %v1542 = vpop.permute.xlu0 %1541
  %1545 = vset.pattern.permute.xlu0 0
  %1546 = vperm.xlu0 %1545, %v1496
  %v1547 = vpop.permute.xlu0 %1546
  %v1549 = vmul.f32 %v1497, %v1532
  %v1550 = vmul.f32 %v1498, %v1537
  %v1551 = vmul.f32 %v1499, %v1542
  %v1552 = vmul.f32 %v1500, %v1547
  %v1553 = vmul.f32 %v1501, %v1532
  %v1554 = vmul.f32 %v1502, %v1537
  %v1555 = vmul.f32 %v1503, %v1542
  %v1556 = vmul.f32 %v1504, %v1547
  %v1557 = vmul.f32 %v1505, %v1532
  %v1558 = vmul.f32 %v1506, %v1537
  %v1559 = vmul.f32 %v1507, %v1542
  %v1560 = vmul.f32 %v1508, %v1547
  %v1561 = vmul.f32 %v1509, %v1532
  %v1562 = vmul.f32 %v1510, %v1537
  %v1563 = vmul.f32 %v1511, %v1542
  %v1564 = vmul.f32 %v1512, %v1547
  %v1565 = vmul.f32 %v1513, %v1532
  %v1566 = vmul.f32 %v1514, %v1537
  %v1567 = vmul.f32 %v1515, %v1542
  %v1568 = vmul.f32 %v1516, %v1547
  %v1569 = vmul.f32 %v1517, %v1532
  %v1570 = vmul.f32 %v1518, %v1537
  %v1571 = vmul.f32 %v1519, %v1542
  %v1572 = vmul.f32 %v1520, %v1547
  %v1573 = vmul.f32 %v1521, %v1532
  %v1574 = vmul.f32 %v1522, %v1537
  %v1575 = vmul.f32 %v1523, %v1542
  %v1576 = vmul.f32 %v1524, %v1547
  %v1577 = vmul.f32 %v1525, %v1532
  %v1578 = vmul.f32 %v1526, %v1537
  %v1579 = vmul.f32 %v1527, %v1542
  %v1580 = vmul.f32 %v1528, %v1547
  %v1581 = vld [vmem:[%s4] sm:$0xff]
  %v1582 = vld [vmem:[%s4 + $0x8] sm:$0xff]
  %v1583 = vld [vmem:[%s4 + $0x10] sm:$0xff]
  %v1584 = vld [vmem:[%s4 + $0x18] sm:$0xff]
  %1586 = vset.pattern.permute.xlu0 0
  %1587 = vperm.xlu0 %1586, %v1581
  %v1588 = vpop.permute.xlu0 %1587
  %1591 = vset.pattern.permute.xlu0 0
  %1592 = vperm.xlu0 %1591, %v1582
  %v1593 = vpop.permute.xlu0 %1592
  %1596 = vset.pattern.permute.xlu0 0
  %1597 = vperm.xlu0 %1596, %v1583
  %v1598 = vpop.permute.xlu0 %1597
  %1601 = vset.pattern.permute.xlu0 0
  %1602 = vperm.xlu0 %1601, %v1584
  %v1603 = vpop.permute.xlu0 %1602
  %v1605 = vadd.f32 %v1549, %v1588
  %v1606 = vadd.f32 %v1550, %v1593
  %v1607 = vadd.f32 %v1551, %v1598
  %v1608 = vadd.f32 %v1552, %v1603
  %v1609 = vadd.f32 %v1553, %v1588
  %v1610 = vadd.f32 %v1554, %v1593
  %v1611 = vadd.f32 %v1555, %v1598
  %v1612 = vadd.f32 %v1556, %v1603
  %v1613 = vadd.f32 %v1557, %v1588
  %v1614 = vadd.f32 %v1558, %v1593
  %v1615 = vadd.f32 %v1559, %v1598
  %v1616 = vadd.f32 %v1560, %v1603
  %v1617 = vadd.f32 %v1561, %v1588
  %v1618 = vadd.f32 %v1562, %v1593
  %v1619 = vadd.f32 %v1563, %v1598
  %v1620 = vadd.f32 %v1564, %v1603
  %v1621 = vadd.f32 %v1565, %v1588
  %v1622 = vadd.f32 %v1566, %v1593
  %v1623 = vadd.f32 %v1567, %v1598
  %v1624 = vadd.f32 %v1568, %v1603
  %v1625 = vadd.f32 %v1569, %v1588
  %v1626 = vadd.f32 %v1570, %v1593
  %v1627 = vadd.f32 %v1571, %v1598
  %v1628 = vadd.f32 %v1572, %v1603
  %v1629 = vadd.f32 %v1573, %v1588
  %v1630 = vadd.f32 %v1574, %v1593
  %v1631 = vadd.f32 %v1575, %v1598
  %v1632 = vadd.f32 %v1576, %v1603
  %v1633 = vadd.f32 %v1577, %v1588
  %v1634 = vadd.f32 %v1578, %v1593
  %v1635 = vadd.f32 %v1579, %v1598
  %v1636 = vadd.f32 %v1580, %v1603
  %v1637 = vxor.u32 %v1605, 2147483648
  %v1638 = vxor.u32 %v1606, 2147483648
  %v1639 = vxor.u32 %v1607, 2147483648
  %v1640 = vxor.u32 %v1608, 2147483648
  %v1641 = vxor.u32 %v1609, 2147483648
  %v1642 = vxor.u32 %v1610, 2147483648
  %v1643 = vxor.u32 %v1611, 2147483648
  %v1644 = vxor.u32 %v1612, 2147483648
  %v1645 = vxor.u32 %v1613, 2147483648
  %v1646 = vxor.u32 %v1614, 2147483648
  %v1647 = vxor.u32 %v1615, 2147483648
  %v1648 = vxor.u32 %v1616, 2147483648
  %v1649 = vxor.u32 %v1617, 2147483648
  %v1650 = vxor.u32 %v1618, 2147483648
  %v1651 = vxor.u32 %v1619, 2147483648
  %v1652 = vxor.u32 %v1620, 2147483648
  %v1653 = vxor.u32 %v1621, 2147483648
  %v1654 = vxor.u32 %v1622, 2147483648
  %v1655 = vxor.u32 %v1623, 2147483648
  %v1656 = vxor.u32 %v1624, 2147483648
  %v1657 = vxor.u32 %v1625, 2147483648
  %v1658 = vxor.u32 %v1626, 2147483648
  %v1659 = vxor.u32 %v1627, 2147483648
  %v1660 = vxor.u32 %v1628, 2147483648
  %v1661 = vxor.u32 %v1629, 2147483648
  %v1662 = vxor.u32 %v1630, 2147483648
  %v1663 = vxor.u32 %v1631, 2147483648
  %v1664 = vxor.u32 %v1632, 2147483648
  %v1665 = vxor.u32 %v1633, 2147483648
  %v1666 = vxor.u32 %v1634, 2147483648
  %v1667 = vxor.u32 %v1635, 2147483648
  %v1668 = vxor.u32 %v1636, 2147483648
  %v1669 = vmul.f32 %v1637, 1.442695
  %v1670 = vpow.pop %v1669
  %v1671 = vmul.f32 %v1638, 1.442695
  %v1672 = vpow.pop %v1671
  %v1673 = vmul.f32 %v1639, 1.442695
  %v1674 = vpow.pop %v1673
  %v1675 = vmul.f32 %v1640, 1.442695
  %v1676 = vpow.pop %v1675
  %v1677 = vmul.f32 %v1641, 1.442695
  %v1678 = vpow.pop %v1677
  %v1679 = vmul.f32 %v1642, 1.442695
  %v1680 = vpow.pop %v1679
  %v1681 = vmul.f32 %v1643, 1.442695
  %v1682 = vpow.pop %v1681
  %v1683 = vmul.f32 %v1644, 1.442695
  %v1684 = vpow.pop %v1683
  %v1685 = vmul.f32 %v1645, 1.442695
  %v1686 = vpow.pop %v1685
  %v1687 = vmul.f32 %v1646, 1.442695
  %v1688 = vpow.pop %v1687
  %v1689 = vmul.f32 %v1647, 1.442695
  %v1690 = vpow.pop %v1689
  %v1691 = vmul.f32 %v1648, 1.442695
  %v1692 = vpow.pop %v1691
  %v1693 = vmul.f32 %v1649, 1.442695
  %v1694 = vpow.pop %v1693
  %v1695 = vmul.f32 %v1650, 1.442695
  %v1696 = vpow.pop %v1695
  %v1697 = vmul.f32 %v1651, 1.442695
  %v1698 = vpow.pop %v1697
  %v1699 = vmul.f32 %v1652, 1.442695
  %v1700 = vpow.pop %v1699
  %v1701 = vmul.f32 %v1653, 1.442695
  %v1702 = vpow.pop %v1701
  %v1703 = vmul.f32 %v1654, 1.442695
  %v1704 = vpow.pop %v1703
  %v1705 = vmul.f32 %v1655, 1.442695
  %v1706 = vpow.pop %v1705
  %v1707 = vmul.f32 %v1656, 1.442695
  %v1708 = vpow.pop %v1707
  %v1709 = vmul.f32 %v1657, 1.442695
  %v1710 = vpow.pop %v1709
  %v1711 = vmul.f32 %v1658, 1.442695
  %v1712 = vpow.pop %v1711
  %v1713 = vmul.f32 %v1659, 1.442695
  %v1714 = vpow.pop %v1713
  %v1715 = vmul.f32 %v1660, 1.442695
  %v1716 = vpow.pop %v1715
  %v1717 = vmul.f32 %v1661, 1.442695
  %v1718 = vpow.pop %v1717
  %v1719 = vmul.f32 %v1662, 1.442695
  %v1720 = vpow.pop %v1719
  %v1721 = vmul.f32 %v1663, 1.442695
  %v1722 = vpow.pop %v1721
  %v1723 = vmul.f32 %v1664, 1.442695
  %v1724 = vpow.pop %v1723
  %v1725 = vmul.f32 %v1665, 1.442695
  %v1726 = vpow.pop %v1725
  %v1727 = vmul.f32 %v1666, 1.442695
  %v1728 = vpow.pop %v1727
  %v1729 = vmul.f32 %v1667, 1.442695
  %v1730 = vpow.pop %v1729
  %v1731 = vmul.f32 %v1668, 1.442695
  %v1732 = vpow.pop %v1731
  %v1733 = vadd.f32 %v1670, 1.0
  %v1734 = vadd.f32 %v1672, 1.0
  %v1735 = vadd.f32 %v1674, 1.0
  %v1736 = vadd.f32 %v1676, 1.0
  %v1737 = vadd.f32 %v1678, 1.0
  %v1738 = vadd.f32 %v1680, 1.0
  %v1739 = vadd.f32 %v1682, 1.0
  %v1740 = vadd.f32 %v1684, 1.0
  %v1741 = vadd.f32 %v1686, 1.0
  %v1742 = vadd.f32 %v1688, 1.0
  %v1743 = vadd.f32 %v1690, 1.0
  %v1744 = vadd.f32 %v1692, 1.0
  %v1745 = vadd.f32 %v1694, 1.0
  %v1746 = vadd.f32 %v1696, 1.0
  %v1747 = vadd.f32 %v1698, 1.0
  %v1748 = vadd.f32 %v1700, 1.0
  %v1749 = vadd.f32 %v1702, 1.0
  %v1750 = vadd.f32 %v1704, 1.0
  %v1751 = vadd.f32 %v1706, 1.0
  %v1752 = vadd.f32 %v1708, 1.0
  %v1753 = vadd.f32 %v1710, 1.0
  %v1754 = vadd.f32 %v1712, 1.0
  %v1755 = vadd.f32 %v1714, 1.0
  %v1756 = vadd.f32 %v1716, 1.0
  %v1757 = vadd.f32 %v1718, 1.0
  %v1758 = vadd.f32 %v1720, 1.0
  %v1759 = vadd.f32 %v1722, 1.0
  %v1760 = vadd.f32 %v1724, 1.0
  %v1761 = vadd.f32 %v1726, 1.0
  %v1762 = vadd.f32 %v1728, 1.0
  %v1763 = vadd.f32 %v1730, 1.0
  %v1764 = vadd.f32 %v1732, 1.0
  %v1765 = vrcp.pop %v1733
  %v1766 = vmul.f32 %v1733, %v1765
  %v1767 = vsub.f32 1.0, %v1766
  %v1768 = vmul.f32 %v1765, %v1767
  %v1769 = vadd.f32 %v1765, %v1768
  %vm1770 = vweird.f32 %v1733
  %vm1771 = vweird.f32 %v1765
  %vm1772 = vmor %vm1770, %vm1771
  %v1773 = vsel %vm1772, %v1765, %v1769
  %v1774 = vand.u32 2147483647, %v1733
  %vm1775 = vcmp.eq.f32.partialorder %v1774, 8.507059e+37
  %v1776 = vand.u32 %v1733, 2147483648
  %v1777 = vor.u32 1.1754944e-38, %v1776
  %v1778 = vsel %vm1775, %v1777, %v1773
  %v1779 = vmul.f32 1.0, %v1778
  %v1780 = vrcp.pop %v1734
  %v1781 = vmul.f32 %v1734, %v1780
  %v1782 = vsub.f32 1.0, %v1781
  %v1783 = vmul.f32 %v1780, %v1782
  %v1784 = vadd.f32 %v1780, %v1783
  %vm1785 = vweird.f32 %v1734
  %vm1786 = vweird.f32 %v1780
  %vm1787 = vmor %vm1785, %vm1786
  %v1788 = vsel %vm1787, %v1780, %v1784
  %v1789 = vand.u32 2147483647, %v1734
  %vm1790 = vcmp.eq.f32.partialorder %v1789, 8.507059e+37
  %v1791 = vand.u32 %v1734, 2147483648
  %v1792 = vor.u32 1.1754944e-38, %v1791
  %v1793 = vsel %vm1790, %v1792, %v1788
  %v1794 = vmul.f32 1.0, %v1793
  %v1795 = vrcp.pop %v1735
  %v1796 = vmul.f32 %v1735, %v1795
  %v1797 = vsub.f32 1.0, %v1796
  %v1798 = vmul.f32 %v1795, %v1797
  %v1799 = vadd.f32 %v1795, %v1798
  %vm1800 = vweird.f32 %v1735
  %vm1801 = vweird.f32 %v1795
  %vm1802 = vmor %vm1800, %vm1801
  %v1803 = vsel %vm1802, %v1795, %v1799
  %v1804 = vand.u32 2147483647, %v1735
  %vm1805 = vcmp.eq.f32.partialorder %v1804, 8.507059e+37
  %v1806 = vand.u32 %v1735, 2147483648
  %v1807 = vor.u32 1.1754944e-38, %v1806
  %v1808 = vsel %vm1805, %v1807, %v1803
  %v1809 = vmul.f32 1.0, %v1808
  %v1810 = vrcp.pop %v1736
  %v1811 = vmul.f32 %v1736, %v1810
  %v1812 = vsub.f32 1.0, %v1811
  %v1813 = vmul.f32 %v1810, %v1812
  %v1814 = vadd.f32 %v1810, %v1813
  %vm1815 = vweird.f32 %v1736
  %vm1816 = vweird.f32 %v1810
  %vm1817 = vmor %vm1815, %vm1816
  %v1818 = vsel %vm1817, %v1810, %v1814
  %v1819 = vand.u32 2147483647, %v1736
  %vm1820 = vcmp.eq.f32.partialorder %v1819, 8.507059e+37
  %v1821 = vand.u32 %v1736, 2147483648
  %v1822 = vor.u32 1.1754944e-38, %v1821
  %v1823 = vsel %vm1820, %v1822, %v1818
  %v1824 = vmul.f32 1.0, %v1823
  %v1825 = vrcp.pop %v1737
  %v1826 = vmul.f32 %v1737, %v1825
  %v1827 = vsub.f32 1.0, %v1826
  %v1828 = vmul.f32 %v1825, %v1827
  %v1829 = vadd.f32 %v1825, %v1828
  %vm1830 = vweird.f32 %v1737
  %vm1831 = vweird.f32 %v1825
  %vm1832 = vmor %vm1830, %vm1831
  %v1833 = vsel %vm1832, %v1825, %v1829
  %v1834 = vand.u32 2147483647, %v1737
  %vm1835 = vcmp.eq.f32.partialorder %v1834, 8.507059e+37
  %v1836 = vand.u32 %v1737, 2147483648
  %v1837 = vor.u32 1.1754944e-38, %v1836
  %v1838 = vsel %vm1835, %v1837, %v1833
  %v1839 = vmul.f32 1.0, %v1838
  %v1840 = vrcp.pop %v1738
  %v1841 = vmul.f32 %v1738, %v1840
  %v1842 = vsub.f32 1.0, %v1841
  %v1843 = vmul.f32 %v1840, %v1842
  %v1844 = vadd.f32 %v1840, %v1843
  %vm1845 = vweird.f32 %v1738
  %vm1846 = vweird.f32 %v1840
  %vm1847 = vmor %vm1845, %vm1846
  %v1848 = vsel %vm1847, %v1840, %v1844
  %v1849 = vand.u32 2147483647, %v1738
  %vm1850 = vcmp.eq.f32.partialorder %v1849, 8.507059e+37
  %v1851 = vand.u32 %v1738, 2147483648
  %v1852 = vor.u32 1.1754944e-38, %v1851
  %v1853 = vsel %vm1850, %v1852, %v1848
  %v1854 = vmul.f32 1.0, %v1853
  %v1855 = vrcp.pop %v1739
  %v1856 = vmul.f32 %v1739, %v1855
  %v1857 = vsub.f32 1.0, %v1856
  %v1858 = vmul.f32 %v1855, %v1857
  %v1859 = vadd.f32 %v1855, %v1858
  %vm1860 = vweird.f32 %v1739
  %vm1861 = vweird.f32 %v1855
  %vm1862 = vmor %vm1860, %vm1861
  %v1863 = vsel %vm1862, %v1855, %v1859
  %v1864 = vand.u32 2147483647, %v1739
  %vm1865 = vcmp.eq.f32.partialorder %v1864, 8.507059e+37
  %v1866 = vand.u32 %v1739, 2147483648
  %v1867 = vor.u32 1.1754944e-38, %v1866
  %v1868 = vsel %vm1865, %v1867, %v1863
  %v1869 = vmul.f32 1.0, %v1868
  %v1870 = vrcp.pop %v1740
  %v1871 = vmul.f32 %v1740, %v1870
  %v1872 = vsub.f32 1.0, %v1871
  %v1873 = vmul.f32 %v1870, %v1872
  %v1874 = vadd.f32 %v1870, %v1873
  %vm1875 = vweird.f32 %v1740
  %vm1876 = vweird.f32 %v1870
  %vm1877 = vmor %vm1875, %vm1876
  %v1878 = vsel %vm1877, %v1870, %v1874
  %v1879 = vand.u32 2147483647, %v1740
  %vm1880 = vcmp.eq.f32.partialorder %v1879, 8.507059e+37
  %v1881 = vand.u32 %v1740, 2147483648
  %v1882 = vor.u32 1.1754944e-38, %v1881
  %v1883 = vsel %vm1880, %v1882, %v1878
  %v1884 = vmul.f32 1.0, %v1883
  %v1885 = vrcp.pop %v1741
  %v1886 = vmul.f32 %v1741, %v1885
  %v1887 = vsub.f32 1.0, %v1886
  %v1888 = vmul.f32 %v1885, %v1887
  %v1889 = vadd.f32 %v1885, %v1888
  %vm1890 = vweird.f32 %v1741
  %vm1891 = vweird.f32 %v1885
  %vm1892 = vmor %vm1890, %vm1891
  %v1893 = vsel %vm1892, %v1885, %v1889
  %v1894 = vand.u32 2147483647, %v1741
  %vm1895 = vcmp.eq.f32.partialorder %v1894, 8.507059e+37
  %v1896 = vand.u32 %v1741, 2147483648
  %v1897 = vor.u32 1.1754944e-38, %v1896
  %v1898 = vsel %vm1895, %v1897, %v1893
  %v1899 = vmul.f32 1.0, %v1898
  %v1900 = vrcp.pop %v1742
  %v1901 = vmul.f32 %v1742, %v1900
  %v1902 = vsub.f32 1.0, %v1901
  %v1903 = vmul.f32 %v1900, %v1902
  %v1904 = vadd.f32 %v1900, %v1903
  %vm1905 = vweird.f32 %v1742
  %vm1906 = vweird.f32 %v1900
  %vm1907 = vmor %vm1905, %vm1906
  %v1908 = vsel %vm1907, %v1900, %v1904
  %v1909 = vand.u32 2147483647, %v1742
  %vm1910 = vcmp.eq.f32.partialorder %v1909, 8.507059e+37
  %v1911 = vand.u32 %v1742, 2147483648
  %v1912 = vor.u32 1.1754944e-38, %v1911
  %v1913 = vsel %vm1910, %v1912, %v1908
  %v1914 = vmul.f32 1.0, %v1913
  %v1915 = vrcp.pop %v1743
  %v1916 = vmul.f32 %v1743, %v1915
  %v1917 = vsub.f32 1.0, %v1916
  %v1918 = vmul.f32 %v1915, %v1917
  %v1919 = vadd.f32 %v1915, %v1918
  %vm1920 = vweird.f32 %v1743
  %vm1921 = vweird.f32 %v1915
  %vm1922 = vmor %vm1920, %vm1921
  %v1923 = vsel %vm1922, %v1915, %v1919
  %v1924 = vand.u32 2147483647, %v1743
  %vm1925 = vcmp.eq.f32.partialorder %v1924, 8.507059e+37
  %v1926 = vand.u32 %v1743, 2147483648
  %v1927 = vor.u32 1.1754944e-38, %v1926
  %v1928 = vsel %vm1925, %v1927, %v1923
  %v1929 = vmul.f32 1.0, %v1928
  %v1930 = vrcp.pop %v1744
  %v1931 = vmul.f32 %v1744, %v1930
  %v1932 = vsub.f32 1.0, %v1931
  %v1933 = vmul.f32 %v1930, %v1932
  %v1934 = vadd.f32 %v1930, %v1933
  %vm1935 = vweird.f32 %v1744
  %vm1936 = vweird.f32 %v1930
  %vm1937 = vmor %vm1935, %vm1936
  %v1938 = vsel %vm1937, %v1930, %v1934
  %v1939 = vand.u32 2147483647, %v1744
  %vm1940 = vcmp.eq.f32.partialorder %v1939, 8.507059e+37
  %v1941 = vand.u32 %v1744, 2147483648
  %v1942 = vor.u32 1.1754944e-38, %v1941
  %v1943 = vsel %vm1940, %v1942, %v1938
  %v1944 = vmul.f32 1.0, %v1943
  %v1945 = vrcp.pop %v1745
  %v1946 = vmul.f32 %v1745, %v1945
  %v1947 = vsub.f32 1.0, %v1946
  %v1948 = vmul.f32 %v1945, %v1947
  %v1949 = vadd.f32 %v1945, %v1948
  %vm1950 = vweird.f32 %v1745
  %vm1951 = vweird.f32 %v1945
  %vm1952 = vmor %vm1950, %vm1951
  %v1953 = vsel %vm1952, %v1945, %v1949
  %v1954 = vand.u32 2147483647, %v1745
  %vm1955 = vcmp.eq.f32.partialorder %v1954, 8.507059e+37
  %v1956 = vand.u32 %v1745, 2147483648
  %v1957 = vor.u32 1.1754944e-38, %v1956
  %v1958 = vsel %vm1955, %v1957, %v1953
  %v1959 = vmul.f32 1.0, %v1958
  %v1960 = vrcp.pop %v1746
  %v1961 = vmul.f32 %v1746, %v1960
  %v1962 = vsub.f32 1.0, %v1961
  %v1963 = vmul.f32 %v1960, %v1962
  %v1964 = vadd.f32 %v1960, %v1963
  %vm1965 = vweird.f32 %v1746
  %vm1966 = vweird.f32 %v1960
  %vm1967 = vmor %vm1965, %vm1966
  %v1968 = vsel %vm1967, %v1960, %v1964
  %v1969 = vand.u32 2147483647, %v1746
  %vm1970 = vcmp.eq.f32.partialorder %v1969, 8.507059e+37
  %v1971 = vand.u32 %v1746, 2147483648
  %v1972 = vor.u32 1.1754944e-38, %v1971
  %v1973 = vsel %vm1970, %v1972, %v1968
  %v1974 = vmul.f32 1.0, %v1973
  %v1975 = vrcp.pop %v1747
  %v1976 = vmul.f32 %v1747, %v1975
  %v1977 = vsub.f32 1.0, %v1976
  %v1978 = vmul.f32 %v1975, %v1977
  %v1979 = vadd.f32 %v1975, %v1978
  %vm1980 = vweird.f32 %v1747
  %vm1981 = vweird.f32 %v1975
  %vm1982 = vmor %vm1980, %vm1981
  %v1983 = vsel %vm1982, %v1975, %v1979
  %v1984 = vand.u32 2147483647, %v1747
  %vm1985 = vcmp.eq.f32.partialorder %v1984, 8.507059e+37
  %v1986 = vand.u32 %v1747, 2147483648
  %v1987 = vor.u32 1.1754944e-38, %v1986
  %v1988 = vsel %vm1985, %v1987, %v1983
  %v1989 = vmul.f32 1.0, %v1988
  %v1990 = vrcp.pop %v1748
  %v1991 = vmul.f32 %v1748, %v1990
  %v1992 = vsub.f32 1.0, %v1991
  %v1993 = vmul.f32 %v1990, %v1992
  %v1994 = vadd.f32 %v1990, %v1993
  %vm1995 = vweird.f32 %v1748
  %vm1996 = vweird.f32 %v1990
  %vm1997 = vmor %vm1995, %vm1996
  %v1998 = vsel %vm1997, %v1990, %v1994
  %v1999 = vand.u32 2147483647, %v1748
  %vm2000 = vcmp.eq.f32.partialorder %v1999, 8.507059e+37
  %v2001 = vand.u32 %v1748, 2147483648
  %v2002 = vor.u32 1.1754944e-38, %v2001
  %v2003 = vsel %vm2000, %v2002, %v1998
  %v2004 = vmul.f32 1.0, %v2003
  %v2005 = vrcp.pop %v1749
  %v2006 = vmul.f32 %v1749, %v2005
  %v2007 = vsub.f32 1.0, %v2006
  %v2008 = vmul.f32 %v2005, %v2007
  %v2009 = vadd.f32 %v2005, %v2008
  %vm2010 = vweird.f32 %v1749
  %vm2011 = vweird.f32 %v2005
  %vm2012 = vmor %vm2010, %vm2011
  %v2013 = vsel %vm2012, %v2005, %v2009
  %v2014 = vand.u32 2147483647, %v1749
  %vm2015 = vcmp.eq.f32.partialorder %v2014, 8.507059e+37
  %v2016 = vand.u32 %v1749, 2147483648
  %v2017 = vor.u32 1.1754944e-38, %v2016
  %v2018 = vsel %vm2015, %v2017, %v2013
  %v2019 = vmul.f32 1.0, %v2018
  %v2020 = vrcp.pop %v1750
  %v2021 = vmul.f32 %v1750, %v2020
  %v2022 = vsub.f32 1.0, %v2021
  %v2023 = vmul.f32 %v2020, %v2022
  %v2024 = vadd.f32 %v2020, %v2023
  %vm2025 = vweird.f32 %v1750
  %vm2026 = vweird.f32 %v2020
  %vm2027 = vmor %vm2025, %vm2026
  %v2028 = vsel %vm2027, %v2020, %v2024
  %v2029 = vand.u32 2147483647, %v1750
  %vm2030 = vcmp.eq.f32.partialorder %v2029, 8.507059e+37
  %v2031 = vand.u32 %v1750, 2147483648
  %v2032 = vor.u32 1.1754944e-38, %v2031
  %v2033 = vsel %vm2030, %v2032, %v2028
  %v2034 = vmul.f32 1.0, %v2033
  %v2035 = vrcp.pop %v1751
  %v2036 = vmul.f32 %v1751, %v2035
  %v2037 = vsub.f32 1.0, %v2036
  %v2038 = vmul.f32 %v2035, %v2037
  %v2039 = vadd.f32 %v2035, %v2038
  %vm2040 = vweird.f32 %v1751
  %vm2041 = vweird.f32 %v2035
  %vm2042 = vmor %vm2040, %vm2041
  %v2043 = vsel %vm2042, %v2035, %v2039
  %v2044 = vand.u32 2147483647, %v1751
  %vm2045 = vcmp.eq.f32.partialorder %v2044, 8.507059e+37
  %v2046 = vand.u32 %v1751, 2147483648
  %v2047 = vor.u32 1.1754944e-38, %v2046
  %v2048 = vsel %vm2045, %v2047, %v2043
  %v2049 = vmul.f32 1.0, %v2048
  %v2050 = vrcp.pop %v1752
  %v2051 = vmul.f32 %v1752, %v2050
  %v2052 = vsub.f32 1.0, %v2051
  %v2053 = vmul.f32 %v2050, %v2052
  %v2054 = vadd.f32 %v2050, %v2053
  %vm2055 = vweird.f32 %v1752
  %vm2056 = vweird.f32 %v2050
  %vm2057 = vmor %vm2055, %vm2056
  %v2058 = vsel %vm2057, %v2050, %v2054
  %v2059 = vand.u32 2147483647, %v1752
  %vm2060 = vcmp.eq.f32.partialorder %v2059, 8.507059e+37
  %v2061 = vand.u32 %v1752, 2147483648
  %v2062 = vor.u32 1.1754944e-38, %v2061
  %v2063 = vsel %vm2060, %v2062, %v2058
  %v2064 = vmul.f32 1.0, %v2063
  %v2065 = vrcp.pop %v1753
  %v2066 = vmul.f32 %v1753, %v2065
  %v2067 = vsub.f32 1.0, %v2066
  %v2068 = vmul.f32 %v2065, %v2067
  %v2069 = vadd.f32 %v2065, %v2068
  %vm2070 = vweird.f32 %v1753
  %vm2071 = vweird.f32 %v2065
  %vm2072 = vmor %vm2070, %vm2071
  %v2073 = vsel %vm2072, %v2065, %v2069
  %v2074 = vand.u32 2147483647, %v1753
  %vm2075 = vcmp.eq.f32.partialorder %v2074, 8.507059e+37
  %v2076 = vand.u32 %v1753, 2147483648
  %v2077 = vor.u32 1.1754944e-38, %v2076
  %v2078 = vsel %vm2075, %v2077, %v2073
  %v2079 = vmul.f32 1.0, %v2078
  %v2080 = vrcp.pop %v1754
  %v2081 = vmul.f32 %v1754, %v2080
  %v2082 = vsub.f32 1.0, %v2081
  %v2083 = vmul.f32 %v2080, %v2082
  %v2084 = vadd.f32 %v2080, %v2083
  %vm2085 = vweird.f32 %v1754
  %vm2086 = vweird.f32 %v2080
  %vm2087 = vmor %vm2085, %vm2086
  %v2088 = vsel %vm2087, %v2080, %v2084
  %v2089 = vand.u32 2147483647, %v1754
  %vm2090 = vcmp.eq.f32.partialorder %v2089, 8.507059e+37
  %v2091 = vand.u32 %v1754, 2147483648
  %v2092 = vor.u32 1.1754944e-38, %v2091
  %v2093 = vsel %vm2090, %v2092, %v2088
  %v2094 = vmul.f32 1.0, %v2093
  %v2095 = vrcp.pop %v1755
  %v2096 = vmul.f32 %v1755, %v2095
  %v2097 = vsub.f32 1.0, %v2096
  %v2098 = vmul.f32 %v2095, %v2097
  %v2099 = vadd.f32 %v2095, %v2098
  %vm2100 = vweird.f32 %v1755
  %vm2101 = vweird.f32 %v2095
  %vm2102 = vmor %vm2100, %vm2101
  %v2103 = vsel %vm2102, %v2095, %v2099
  %v2104 = vand.u32 2147483647, %v1755
  %vm2105 = vcmp.eq.f32.partialorder %v2104, 8.507059e+37
  %v2106 = vand.u32 %v1755, 2147483648
  %v2107 = vor.u32 1.1754944e-38, %v2106
  %v2108 = vsel %vm2105, %v2107, %v2103
  %v2109 = vmul.f32 1.0, %v2108
  %v2110 = vrcp.pop %v1756
  %v2111 = vmul.f32 %v1756, %v2110
  %v2112 = vsub.f32 1.0, %v2111
  %v2113 = vmul.f32 %v2110, %v2112
  %v2114 = vadd.f32 %v2110, %v2113
  %vm2115 = vweird.f32 %v1756
  %vm2116 = vweird.f32 %v2110
  %vm2117 = vmor %vm2115, %vm2116
  %v2118 = vsel %vm2117, %v2110, %v2114
  %v2119 = vand.u32 2147483647, %v1756
  %vm2120 = vcmp.eq.f32.partialorder %v2119, 8.507059e+37
  %v2121 = vand.u32 %v1756, 2147483648
  %v2122 = vor.u32 1.1754944e-38, %v2121
  %v2123 = vsel %vm2120, %v2122, %v2118
  %v2124 = vmul.f32 1.0, %v2123
  %v2125 = vrcp.pop %v1757
  %v2126 = vmul.f32 %v1757, %v2125
  %v2127 = vsub.f32 1.0, %v2126
  %v2128 = vmul.f32 %v2125, %v2127
  %v2129 = vadd.f32 %v2125, %v2128
  %vm2130 = vweird.f32 %v1757
  %vm2131 = vweird.f32 %v2125
  %vm2132 = vmor %vm2130, %vm2131
  %v2133 = vsel %vm2132, %v2125, %v2129
  %v2134 = vand.u32 2147483647, %v1757
  %vm2135 = vcmp.eq.f32.partialorder %v2134, 8.507059e+37
  %v2136 = vand.u32 %v1757, 2147483648
  %v2137 = vor.u32 1.1754944e-38, %v2136
  %v2138 = vsel %vm2135, %v2137, %v2133
  %v2139 = vmul.f32 1.0, %v2138
  %v2140 = vrcp.pop %v1758
  %v2141 = vmul.f32 %v1758, %v2140
  %v2142 = vsub.f32 1.0, %v2141
  %v2143 = vmul.f32 %v2140, %v2142
  %v2144 = vadd.f32 %v2140, %v2143
  %vm2145 = vweird.f32 %v1758
  %vm2146 = vweird.f32 %v2140
  %vm2147 = vmor %vm2145, %vm2146
  %v2148 = vsel %vm2147, %v2140, %v2144
  %v2149 = vand.u32 2147483647, %v1758
  %vm2150 = vcmp.eq.f32.partialorder %v2149, 8.507059e+37
  %v2151 = vand.u32 %v1758, 2147483648
  %v2152 = vor.u32 1.1754944e-38, %v2151
  %v2153 = vsel %vm2150, %v2152, %v2148
  %v2154 = vmul.f32 1.0, %v2153
  %v2155 = vrcp.pop %v1759
  %v2156 = vmul.f32 %v1759, %v2155
  %v2157 = vsub.f32 1.0, %v2156
  %v2158 = vmul.f32 %v2155, %v2157
  %v2159 = vadd.f32 %v2155, %v2158
  %vm2160 = vweird.f32 %v1759
  %vm2161 = vweird.f32 %v2155
  %vm2162 = vmor %vm2160, %vm2161
  %v2163 = vsel %vm2162, %v2155, %v2159
  %v2164 = vand.u32 2147483647, %v1759
  %vm2165 = vcmp.eq.f32.partialorder %v2164, 8.507059e+37
  %v2166 = vand.u32 %v1759, 2147483648
  %v2167 = vor.u32 1.1754944e-38, %v2166
  %v2168 = vsel %vm2165, %v2167, %v2163
  %v2169 = vmul.f32 1.0, %v2168
  %v2170 = vrcp.pop %v1760
  %v2171 = vmul.f32 %v1760, %v2170
  %v2172 = vsub.f32 1.0, %v2171
  %v2173 = vmul.f32 %v2170, %v2172
  %v2174 = vadd.f32 %v2170, %v2173
  %vm2175 = vweird.f32 %v1760
  %vm2176 = vweird.f32 %v2170
  %vm2177 = vmor %vm2175, %vm2176
  %v2178 = vsel %vm2177, %v2170, %v2174
  %v2179 = vand.u32 2147483647, %v1760
  %vm2180 = vcmp.eq.f32.partialorder %v2179, 8.507059e+37
  %v2181 = vand.u32 %v1760, 2147483648
  %v2182 = vor.u32 1.1754944e-38, %v2181
  %v2183 = vsel %vm2180, %v2182, %v2178
  %v2184 = vmul.f32 1.0, %v2183
  %v2185 = vrcp.pop %v1761
  %v2186 = vmul.f32 %v1761, %v2185
  %v2187 = vsub.f32 1.0, %v2186
  %v2188 = vmul.f32 %v2185, %v2187
  %v2189 = vadd.f32 %v2185, %v2188
  %vm2190 = vweird.f32 %v1761
  %vm2191 = vweird.f32 %v2185
  %vm2192 = vmor %vm2190, %vm2191
  %v2193 = vsel %vm2192, %v2185, %v2189
  %v2194 = vand.u32 2147483647, %v1761
  %vm2195 = vcmp.eq.f32.partialorder %v2194, 8.507059e+37
  %v2196 = vand.u32 %v1761, 2147483648
  %v2197 = vor.u32 1.1754944e-38, %v2196
  %v2198 = vsel %vm2195, %v2197, %v2193
  %v2199 = vmul.f32 1.0, %v2198
  %v2200 = vrcp.pop %v1762
  %v2201 = vmul.f32 %v1762, %v2200
  %v2202 = vsub.f32 1.0, %v2201
  %v2203 = vmul.f32 %v2200, %v2202
  %v2204 = vadd.f32 %v2200, %v2203
  %vm2205 = vweird.f32 %v1762
  %vm2206 = vweird.f32 %v2200
  %vm2207 = vmor %vm2205, %vm2206
  %v2208 = vsel %vm2207, %v2200, %v2204
  %v2209 = vand.u32 2147483647, %v1762
  %vm2210 = vcmp.eq.f32.partialorder %v2209, 8.507059e+37
  %v2211 = vand.u32 %v1762, 2147483648
  %v2212 = vor.u32 1.1754944e-38, %v2211
  %v2213 = vsel %vm2210, %v2212, %v2208
  %v2214 = vmul.f32 1.0, %v2213
  %v2215 = vrcp.pop %v1763
  %v2216 = vmul.f32 %v1763, %v2215
  %v2217 = vsub.f32 1.0, %v2216
  %v2218 = vmul.f32 %v2215, %v2217
  %v2219 = vadd.f32 %v2215, %v2218
  %vm2220 = vweird.f32 %v1763
  %vm2221 = vweird.f32 %v2215
  %vm2222 = vmor %vm2220, %vm2221
  %v2223 = vsel %vm2222, %v2215, %v2219
  %v2224 = vand.u32 2147483647, %v1763
  %vm2225 = vcmp.eq.f32.partialorder %v2224, 8.507059e+37
  %v2226 = vand.u32 %v1763, 2147483648
  %v2227 = vor.u32 1.1754944e-38, %v2226
  %v2228 = vsel %vm2225, %v2227, %v2223
  %v2229 = vmul.f32 1.0, %v2228
  %v2230 = vrcp.pop %v1764
  %v2231 = vmul.f32 %v1764, %v2230
  %v2232 = vsub.f32 1.0, %v2231
  %v2233 = vmul.f32 %v2230, %v2232
  %v2234 = vadd.f32 %v2230, %v2233
  %vm2235 = vweird.f32 %v1764
  %vm2236 = vweird.f32 %v2230
  %vm2237 = vmor %vm2235, %vm2236
  %v2238 = vsel %vm2237, %v2230, %v2234
  %v2239 = vand.u32 2147483647, %v1764
  %vm2240 = vcmp.eq.f32.partialorder %v2239, 8.507059e+37
  %v2241 = vand.u32 %v1764, 2147483648
  %v2242 = vor.u32 1.1754944e-38, %v2241
  %v2243 = vsel %vm2240, %v2242, %v2238
  %v2244 = vmul.f32 1.0, %v2243
  %2245 = vst.msk [vmem:[%s5] sm:$0xff] %vm52, %v1779
  %2246 = vst.msk [vmem:[%s5 + $0x8] sm:$0xff] %vm52, %v1794
  %2247 = vst.msk [vmem:[%s5 + $0x10] sm:$0xff] %vm52, %v1809
  %2248 = vst.msk [vmem:[%s5 + $0x18] sm:$0xff] %vm52, %v1824
  %2249 = vst.msk [vmem:[%s5 + $0x20] sm:$0xff] %vm52, %v1839
  %2250 = vst.msk [vmem:[%s5 + $0x28] sm:$0xff] %vm52, %v1854
  %2251 = vst.msk [vmem:[%s5 + $0x30] sm:$0xff] %vm52, %v1869
  %2252 = vst.msk [vmem:[%s5 + $0x38] sm:$0xff] %vm52, %v1884
  %2253 = vst.msk [vmem:[%s5 + $0x40] sm:$0xff] %vm52, %v1899
  %2254 = vst.msk [vmem:[%s5 + $0x48] sm:$0xff] %vm52, %v1914
  %2255 = vst.msk [vmem:[%s5 + $0x50] sm:$0xff] %vm52, %v1929
  %2256 = vst.msk [vmem:[%s5 + $0x58] sm:$0xff] %vm52, %v1944
  %2257 = vst.msk [vmem:[%s5 + $0x60] sm:$0xff] %vm52, %v1959
  %2258 = vst.msk [vmem:[%s5 + $0x68] sm:$0xff] %vm52, %v1974
  %2259 = vst.msk [vmem:[%s5 + $0x70] sm:$0xff] %vm52, %v1989
  %2260 = vst.msk [vmem:[%s5 + $0x78] sm:$0xff] %vm52, %v2004
  %2261 = vst.msk [vmem:[%s5 + $0x80] sm:$0xff] %vm52, %v2019
  %2262 = vst.msk [vmem:[%s5 + $0x88] sm:$0xff] %vm52, %v2034
  %2263 = vst.msk [vmem:[%s5 + $0x90] sm:$0xff] %vm52, %v2049
  %2264 = vst.msk [vmem:[%s5 + $0x98] sm:$0xff] %vm52, %v2064
  %2265 = vst.msk [vmem:[%s5 + $0xa0] sm:$0xff] %vm52, %v2079
  %2266 = vst.msk [vmem:[%s5 + $0xa8] sm:$0xff] %vm52, %v2094
  %2267 = vst.msk [vmem:[%s5 + $0xb0] sm:$0xff] %vm52, %v2109
  %2268 = vst.msk [vmem:[%s5 + $0xb8] sm:$0xff] %vm52, %v2124
  %2269 = vst.msk [vmem:[%s5 + $0xc0] sm:$0xff] %vm52, %v2139
  %2270 = vst.msk [vmem:[%s5 + $0xc8] sm:$0xff] %vm52, %v2154
  %2271 = vst.msk [vmem:[%s5 + $0xd0] sm:$0xff] %vm52, %v2169
  %2272 = vst.msk [vmem:[%s5 + $0xd8] sm:$0xff] %vm52, %v2184
  %2273 = vst.msk [vmem:[%s5 + $0xe0] sm:$0xff] %vm52, %v2199
  %2274 = vst.msk [vmem:[%s5 + $0xe8] sm:$0xff] %vm52, %v2214
  %2275 = vst.msk [vmem:[%s5 + $0xf0] sm:$0xff] %vm52, %v2229
  %2276 = vst.msk [vmem:[%s5 + $0xf8] sm:$0xff] %vm52, %v2244
  // Predicated region
  $region22: #{model_forward.1} parent=0 // pred_check
    _
  $region23: #{model_forward.1} parent=0 // pred_check_branch
    %2278 = sbr.rel (0) target = $region25
  $region24: #{model_forward.1} parent=0 // pred_region
    _
  $region25: #{model_forward.1} parent=0 // pred_fallthru
    _
  // Predicated region
  $region26: #{model_forward.1} parent=0 // pred_check
    _
  $region27: #{model_forward.1} parent=0 // pred_check_branch
    %2280 = sbr.rel (0) target = $region29
  $region28: #{model_forward.1} parent=0 // pred_region
    _
  $region29: #{model_forward.1} parent=0 // pred_fallthru
    _

</llo_original>
